<compile_context>
chip_gen: v7x
topology: tpu7x:2x2x1
jax: 0.10.0
libtpu: 0.0.40
codegen_flags: <defaults>
</compile_context>

<pallas_src>
import functools
import itertools

import jax
import jax.numpy as jnp
import numpy as np
from jax.experimental import pallas as pl
from jax.experimental.pallas import tpu as pltpu


# --------------------------------------------------------------------------
# Device-generation helpers
# --------------------------------------------------------------------------
def _tpu_generation():
    try:
        kind = jax.devices()[0].device_kind.lower()
    except Exception:
        return 0
    if "v7" in kind or "7x" in kind:
        return 7
    if "v6" in kind:
        return 6
    if "v5" in kind:
        return 5
    if "v4" in kind:
        return 4
    return 0


def _default_pair_dtype():
    # v6e / v7x VALUs have a packed-bf16 path (2x elementwise throughput);
    # v5e and older do not, so keep the pairwise math in f32 there.
    return jnp.bfloat16 if _tpu_generation() >= 6 else jnp.float32


def _round_up(x, m):
    return ((x + m - 1) // m) * m


# --------------------------------------------------------------------------
# Pallas kernel
# --------------------------------------------------------------------------
def _matcher_cost_kernel(logits_ref, cmap_ref, obox_ref, tbox_ref, c_ref,
                         *, cost_giou_w, pair_dtype):
    # logits_ref: [TN, C]    f32   class logits (row tile)
    # cmap_ref:   [C, Mpad]  bf16  == -cost_class * onehot(tgt_ids)^T (pad cols = 0)
    # obox_ref:   [TN, 16]   f32   cols 0-5 cost_bbox*cxcyczwhd, 6-11 x1y1z1x2y2z2,
    #                              12 volume(+eps), 13-15 clamped (w,h,d)
    # tbox_ref:   [16, Mpad] f32   same layout, transposed
    # c_ref:      [TN, Mpad] f32   cost matrix tile

    # ---- class cost: normalize softmax on the small [TN, C] tensor (exact),
    #      then one MXU matmul against the weight/sign-folded one-hot map ----
    logits = logits_ref[...]
    e = jnp.exp(logits - jnp.max(logits, axis=-1, keepdims=True))
    prob = e / jnp.sum(e, axis=-1, keepdims=True)                 # [TN, C]
    acc = jnp.dot(prob.astype(jnp.bfloat16), cmap_ref[...],
                  preferred_element_type=jnp.float32)             # [TN, Mpad]

    ob = obox_ref[...].astype(pair_dtype)                         # [TN, 16]
    tb = tbox_ref[...].astype(pair_dtype)                         # [16, Mpad]

    # ---- L1 cdist on raw boxes (cost_bbox weight pre-folded into the data) ----
    l1 = jnp.abs(ob[:, 0:1] - tb[0:1, :])
    for d in range(1, 6):
        l1 = l1 + jnp.abs(ob[:, d:d + 1] - tb[d:d + 1, :])
    acc = acc + l1.astype(jnp.float32)

    # ---- pairwise 3D generalized IoU ----
    # Signed intersection extent shared with the enclosing-box extent:
    #   ix = max(dx, 0)          (intersection)
    #   ex = (w_a + w_b) - dx    (enclosing box)
    dx = jnp.minimum(ob[:, 9:10], tb[9:10, :]) - jnp.maximum(ob[:, 6:7], tb[6:7, :])
    dy = jnp.minimum(ob[:, 10:11], tb[10:11, :]) - jnp.maximum(ob[:, 7:8], tb[7:8, :])
    dz = jnp.minimum(ob[:, 11:12], tb[11:12, :]) - jnp.maximum(ob[:, 8:9], tb[8:9, :])

    inter = (jnp.maximum(dx, 0.0) * jnp.maximum(dy, 0.0) * jnp.maximum(dz, 0.0))
    vol_c = (((ob[:, 13:14] + tb[13:14, :]) - dx)
             * ((ob[:, 14:15] + tb[14:15, :]) - dy)
             * ((ob[:, 15:16] + tb[15:16, :]) - dz))
    union = (ob[:, 12:13] + tb[12:13, :]) - inter    # packed volumes carry +eps

    inter_f = inter.astype(jnp.float32)
    union_f = union.astype(jnp.float32)
    volc_f = vol_c.astype(jnp.float32)
    # cost_giou = -(iou - (vol_c - union)/vol_c) = 1 - inter/union - union/vol_c
    acc = acc + cost_giou_w * (
        1.0
        - inter_f * pl.reciprocal(union_f, approx=True)
        - union_f * pl.reciprocal(volc_f, approx=True))

    c_ref[...] = acc


# --------------------------------------------------------------------------
# Wrapper
# --------------------------------------------------------------------------
def _pack_boxes(boxes, cost_bbox_w):
    """[K,6] cxcyczwhd -> [K,16]:
       cost_bbox*raw(6) | corners(6) | volume+eps(1) | clamped whd(3)."""
    boxes = boxes.astype(jnp.float32)
    c = boxes[:, 0:3]
    s = jnp.maximum(boxes[:, 3:6], 1e-6)
    lo = c - 0.5 * s
    hi = c + 0.5 * s
    vol = s[:, 0:1] * s[:, 1:2] * s[:, 2:3] + 5e-13    # eps keeps 1/union sane
    return jnp.concatenate([cost_bbox_w * boxes, lo, hi, vol, s], axis=-1)


def _choose_row_tiling(n, m_pad, gen):
    """Pick (tile_n, n_pad): large tiles on 128 MiB parts, capped on 64 MiB v7x,
    and an even tile count on v7x so both TensorCores get balanced work."""
    n8 = _round_up(max(n, 8), 8)
    if gen >= 7:
        cap = 256 if m_pad >= 1024 else 512
    else:
        cap = 1024 if m_pad <= 512 else 512
    if n8 <= cap:
        if gen >= 7 and n8 >= 16:
            tile_n = _round_up((n8 + 1) // 2, 8)
            return tile_n, 2 * tile_n
        return n8, n8
    tile_n = cap
    n_pad = _round_up(n, tile_n)
    if gen >= 7 and (n_pad // tile_n) % 2 == 1:
        n_pad += tile_n                                # even tile count (2 TCs)
    return tile_n, n_pad


def _vmem_limit_bytes(tile_n, m_pad, num_classes, pair_dtype, gen):
    cap = (64 if (gen >= 7 or gen == 0) else 128) << 20   # physical VMEM per TC
    pair_bytes = 2 if pair_dtype == jnp.bfloat16 else 4
    bufs = (2 * tile_n * num_classes * 4        # logits (double-buffered)
            + 2 * num_classes * m_pad * 2       # class map (worst case 2 bufs)
            + 2 * tile_n * 16 * 4               # pred box table
            + 2 * 16 * m_pad * 4                # target box table
            + 2 * tile_n * m_pad * 4)           # output tile
    temps = 8 * tile_n * m_pad * max(pair_bytes, 4)   # temporaries headroom
    want = int(1.25 * (bufs + temps))
    return max(32 << 20, min(want, cap - (8 << 20)))


def matcher_cost_matrix(pred_logits, pred_boxes, tgt_ids, tgt_bbox,
                        cost_class=1.0, cost_bbox=5.0, cost_giou=2.0,
                        pair_dtype=None):
    """Computes the matching cost matrix C with a Pallas TPU kernel.

    pred_logits: [bs, num_queries, num_classes]
    pred_boxes : [bs, num_queries, 6]  (cx, cy, cz, w, h, d)
    tgt_ids    : [M] int (concatenated over batch)
    tgt_bbox   : [M, 6]  (concatenated over batch)
    returns    : [bs, num_queries, M] float32 cost matrix
    """
    bs, nq, num_classes = pred_logits.shape
    n = bs * nq
    m = int(tgt_bbox.shape[0])

    if m == 0:  # all-empty batch: nothing to match
        return jnp.zeros((bs, nq, 0), jnp.float32)

    gen = _tpu_generation()
    if pair_dtype is None:
        pair_dtype = _default_pair_dtype()

    # lane-dense target padding (Mpad multiple of 128 -> unmasked vst)
    m_pad = max(128, _round_up(m, 128))
    tile_n, n_pad = _choose_row_tiling(n, m_pad, gen)

    dummy_box = jnp.array([[0.5, 0.5, 0.5, 1.0, 1.0, 1.0]], jnp.float32)

    logits = pred_logits.reshape(n, num_classes).astype(jnp.float32)
    out_bbox = pred_boxes.reshape(n, 6).astype(jnp.float32)
    if n_pad > n:
        logits = jnp.concatenate(
            [logits, jnp.zeros((n_pad - n, num_classes), jnp.float32)], axis=0)
        out_bbox = jnp.concatenate(
            [out_bbox, jnp.tile(dummy_box, (n_pad - n, 1))], axis=0)

    tgt_bbox_f = tgt_bbox.astype(jnp.float32)
    if m_pad > m:
        tgt_bbox_f = jnp.concatenate(
            [tgt_bbox_f, jnp.tile(dummy_box, (m_pad - m, 1))], axis=0)

    # class weight & sign folded into the one-hot map; zero columns for padding
    cmap = (-float(cost_class)) * jax.nn.one_hot(
        tgt_ids, num_classes, dtype=jnp.float32).T               # [C, m]
    if m_pad > m:
        cmap = jnp.concatenate(
            [cmap, jnp.zeros((num_classes, m_pad - m), jnp.float32)], axis=1)
    cmap = cmap.astype(jnp.bfloat16)                             # [C, Mpad]

    obox_p = _pack_boxes(out_bbox, float(cost_bbox))             # [Npad, 16]
    tboxT_p = _pack_boxes(tgt_bbox_f, float(cost_bbox)).T        # [16, Mpad]

    kernel = functools.partial(_matcher_cost_kernel,
                               cost_giou_w=float(cost_giou),
                               pair_dtype=pair_dtype)
    vmem_limit = _vmem_limit_bytes(tile_n, m_pad, num_classes, pair_dtype, gen)

    def call(single_buffer_invariant):
        if single_buffer_invariant:
            def const_spec(shape):
                return pl.BlockSpec(shape, lambda i: (0, 0),
                                    pipeline_mode=pl.Buffered(1))
        else:
            def const_spec(shape):
                return pl.BlockSpec(shape, lambda i: (0, 0))
        return pl.pallas_call(
            kernel,
            out_shape=jax.ShapeDtypeStruct((n_pad, m_pad), jnp.float32),
            grid=(n_pad // tile_n,),
            in_specs=[
                pl.BlockSpec((tile_n, num_classes), lambda i: (i, 0)),
                const_spec((num_classes, m_pad)),
                pl.BlockSpec((tile_n, 16), lambda i: (i, 0)),
                const_spec((16, m_pad)),
            ],
            out_specs=pl.BlockSpec((tile_n, m_pad), lambda i: (i, 0)),
            compiler_params=pltpu.CompilerParams(
                dimension_semantics=("parallel",),
                vmem_limit_bytes=vmem_limit),
        )(logits, cmap, obox_p, tboxT_p)

    try:
        # grid-invariant operands single-buffered (VMEM saving, esp. 64 MiB v7x)
        c_pad = call(True)
    except Exception:
        # pipeline_mode=Buffered(1) unsupported here: fall back to default bufs
        c_pad = call(False)

    return c_pad[:n, :m].reshape(bs, nq, m)


# --------------------------------------------------------------------------
# Host-side assignment + top-level matcher
# --------------------------------------------------------------------------
def _linear_sum_assignment_bruteforce(cost):
    """Tiny host-side Hungarian substitute (exact, brute force over columns)."""
    # TODO(synk): scipy.optimize.linear_sum_assignment has no Pallas equivalent;
    # brute force is only viable for toy sizes — swap in scipy/JV for real DETR.
    cost = np.asarray(cost)
    n_rows, n_cols = cost.shape
    assert n_cols <= n_rows
    best, best_perm = None, None
    for perm in itertools.permutations(range(n_rows), n_cols):
        s = sum(cost[perm[j], j] for j in range(n_cols))
        if best is None or s < best:
            best, best_perm = s, perm
    pairs = sorted(zip(best_perm, range(n_cols)))
    rows = np.array([p[0] for p in pairs], dtype=np.int64)
    cols = np.array([p[1] for p in pairs], dtype=np.int64)
    return rows, cols


def hungarian_matcher(outputs, targets, cost_class=1.0, cost_bbox=5.0,
                      cost_giou=2.0):
    """Mirror of HungarianMatcher.forward (soft_token=False)."""
    # TODO(synk): soft_token=True / positive_map branch not implemented.
    tgt_ids = jnp.concatenate([t["labels"] for t in targets])
    tgt_bbox = jnp.concatenate([t["boxes"] for t in targets])

    C = matcher_cost_matrix(outputs["pred_logits"], outputs["pred_boxes"],
                            tgt_ids, tgt_bbox,
                            cost_class=cost_class, cost_bbox=cost_bbox,
                            cost_giou=cost_giou)
    C = jax.block_until_ready(C)
    C_host = np.asarray(C)

    sizes = [int(t["boxes"].shape[0]) for t in targets]
    indices = []
    off = 0
    for i, s in enumerate(sizes):
        sub = C_host[i, :, off:off + s]
        indices.append(_linear_sum_assignment_bruteforce(sub))
        off += s
    return indices, C


# --------------------------------------------------------------------------
# Pure-JAX reference (for sanity check only)
# --------------------------------------------------------------------------
def _reference_cost(pred_logits, pred_boxes, tgt_ids, tgt_bbox,
                    cw=1.0, bw=5.0, gw=2.0):
    bs, nq, C = pred_logits.shape
    prob = jax.nn.softmax(pred_logits.reshape(-1, C).astype(jnp.float32), -1)
    cost_class = -prob[:, tgt_ids]
    ob = pred_boxes.reshape(-1, 6).astype(jnp.float32)
    tb = tgt_bbox.astype(jnp.float32)
    cost_bbox = jnp.sum(jnp.abs(ob[:, None, :] - tb[None, :, :]), axis=-1)

    def corners(b):
        c = b[:, :3]
        s = jnp.maximum(b[:, 3:], 1e-6)
        return jnp.concatenate([c - 0.5 * s, c + 0.5 * s], axis=-1)

    a, b2 = corners(ob), corners(tb)
    lt = jnp.maximum(a[:, None, :3], b2[None, :, :3])
    rb = jnp.minimum(a[:, None, 3:], b2[None, :, 3:])
    whd = jnp.maximum(rb - lt, 0.0)
    inter = whd[..., 0] * whd[..., 1] * whd[..., 2]
    va = jnp.prod(a[:, 3:] - a[:, :3], axis=-1)
    vb = jnp.prod(b2[:, 3:] - b2[:, :3], axis=-1)
    union = va[:, None] + vb[None, :] - inter
    iou = inter / union
    lt2 = jnp.minimum(a[:, None, :3], b2[None, :, :3])
    rb2 = jnp.maximum(a[:, None, 3:], b2[None, :, 3:])
    whd2 = jnp.maximum(rb2 - lt2, 0.0)
    vol_c = whd2[..., 0] * whd2[..., 1] * whd2[..., 2]
    giou = iou - (vol_c - union) / vol_c
    return (bw * cost_bbox + cw * cost_class + gw * (-giou)).reshape(bs, nq, -1)


if __name__ == "__main__":
    key = jax.random.PRNGKey(0)
    bs, num_queries, num_classes = 2, 8, 32
    sizes = [3, 4]  # targets per batch element

    k1, k2, k3, k4, k5 = jax.random.split(key, 5)
    pred_logits = jax.random.normal(k1, (bs, num_queries, num_classes),
                                    dtype=jnp.float32)
    centers = jax.random.uniform(k2, (bs, num_queries, 3),
                                 minval=0.2, maxval=0.8)
    whd = jax.random.uniform(k3, (bs, num_queries, 3),
                             minval=0.05, maxval=0.3)
    pred_boxes = jnp.concatenate([centers, whd], axis=-1)

    targets = []
    ks = jax.random.split(k4, len(sizes) * 2)
    for i, s in enumerate(sizes):
        tc = jax.random.uniform(ks[2 * i], (s, 3), minval=0.2, maxval=0.8)
        twhd = jax.random.uniform(ks[2 * i + 1], (s, 3), minval=0.05,
                                  maxval=0.3)
        labels = jax.random.randint(jax.random.fold_in(k5, i), (s,), 0,
                                    num_classes)
        targets.append({
            "labels": labels.astype(jnp.int32),
            "boxes": jnp.concatenate([tc, twhd], axis=-1),
        })

    outputs = {"pred_logits": pred_logits, "pred_boxes": pred_boxes}

    # default (generation-tuned) path: drives the actual matcher
    indices, C = hungarian_matcher(outputs, targets)
    C = jax.block_until_ready(C)
    assert C.shape == (bs, num_queries, sum(sizes))
    C_np = np.asarray(C)
    assert np.all(np.isfinite(C_np))
    for (r, c), s in zip(indices, sizes):
        assert len(r) == s and len(c) == s

    tgt_ids = jnp.concatenate([t["labels"] for t in targets])
    tgt_bbox = jnp.concatenate([t["boxes"] for t in targets])
    C_ref = np.asarray(_reference_cost(pred_logits, pred_boxes,
                                       tgt_ids, tgt_bbox))

    # f32-pairwise path vs reference: tight tolerance (bf16 MXU + approx recip)
    C_f32 = jax.block_until_ready(
        matcher_cost_matrix(pred_logits, pred_boxes, tgt_ids, tgt_bbox,
                            pair_dtype=jnp.float32))
    err_f32 = float(np.max(np.abs(np.asarray(C_f32) - C_ref)))
    assert err_f32 < 0.03, err_f32

    # default path vs reference: loose tolerance if bf16 pairwise math is on
    tol = 0.03 if _default_pair_dtype() == jnp.float32 else 0.35
    err_def = float(np.max(np.abs(C_np - C_ref)))
    assert err_def < tol, (err_def, tol)

    print("KERNEL_OK")
</pallas_src>

<mosaic_0001>
module attributes {stable_mosaic.version = 11 : i64} {
  func.func @_matcher_cost_kernel(%arg0: i32, %arg1: memref<16x32xf32, #tpu.memory_space<vmem>>, %arg2: memref<32x128xbf16, #tpu.memory_space<vmem>>, %arg3: memref<16x16xf32, #tpu.memory_space<vmem>>, %arg4: memref<16x128xf32, #tpu.memory_space<vmem>>, %arg5: memref<16x128xf32, #tpu.memory_space<vmem>>) attributes {dimension_semantics = [#tpu.dimension_semantics<parallel>], iteration_bounds = array<i64: 1>, scalar_prefetch = 0 : i64, scratch_operands = 0 : i64, tpu.core_type = #tpu.core_type<tc>, window_params = [{transform_indices = @transform_0, window_bounds = array<i64: 16, 32>}, {pipeline_mode = #tpu.pipeline_mode<synchronous>, transform_indices = @transform_1, window_bounds = array<i64: 32, 128>}, {transform_indices = @transform_2, window_bounds = array<i64: 16, 16>}, {pipeline_mode = #tpu.pipeline_mode<synchronous>, transform_indices = @transform_3, window_bounds = array<i64: 16, 128>}, {transform_indices = @transform_4, window_bounds = array<i64: 16, 128>}]} {
    %c0 = arith.constant 0 : index
    %c0_0 = arith.constant 0 : index
    %0 = vector.load %arg1[%c0, %c0_0] : memref<16x32xf32, #tpu.memory_space<vmem>>, vector<16x32xf32>
    %cst = arith.constant dense<0xFF800000> : vector<16xf32>
    %1 = vector.multi_reduction <maximumf>, %0, %cst [1] : vector<16x32xf32> to vector<16xf32>
    %2 = vector.shape_cast %1 : vector<16xf32> to vector<16x1xf32>
    %3 = vector.broadcast %2 : vector<16x1xf32> to vector<16x32xf32>
    %4 = arith.subf %0, %3 : vector<16x32xf32>
    %5 = math.exp %4 : vector<16x32xf32>
    %cst_1 = arith.constant dense<0.000000e+00> : vector<16xf32>
    %6 = vector.multi_reduction <add>, %5, %cst_1 [1] : vector<16x32xf32> to vector<16xf32>
    %7 = vector.shape_cast %6 : vector<16xf32> to vector<16x1xf32>
    %8 = vector.broadcast %7 : vector<16x1xf32> to vector<16x32xf32>
    %9 = arith.divf %5, %8 : vector<16x32xf32>
    %10 = arith.truncf %9 : vector<16x32xf32> to vector<16x32xbf16>
    %c0_2 = arith.constant 0 : index
    %c0_3 = arith.constant 0 : index
    %11 = vector.load %arg2[%c0_2, %c0_3] : memref<32x128xbf16, #tpu.memory_space<vmem>>, vector<32x128xbf16>
    %cst_4 = arith.constant dense<0.000000e+00> : vector<16x128xf32>
    %12 = tpu.matmul %10, %11, %cst_4 {dimension_numbers = #tpu.dot_dimension_numbers<[1], [0], [0], [1], [0, 0, 1, 1], [], []>} : vector<16x32xbf16>, vector<32x128xbf16>, vector<16x128xf32> -> vector<16x128xf32>
    %c0_5 = arith.constant 0 : index
    %c0_6 = arith.constant 0 : index
    %13 = vector.load %arg3[%c0_5, %c0_6] : memref<16x16xf32, #tpu.memory_space<vmem>>, vector<16x16xf32>
    %c0_7 = arith.constant 0 : index
    %c0_8 = arith.constant 0 : index
    %14 = vector.load %arg4[%c0_7, %c0_8] : memref<16x128xf32, #tpu.memory_space<vmem>>, vector<16x128xf32>
    %15 = vector.extract_strided_slice %13 {offsets = [0, 0], sizes = [16, 1], strides = [1, 1]} : vector<16x16xf32> to vector<16x1xf32>
    %16 = vector.extract_strided_slice %14 {offsets = [0, 0], sizes = [1, 128], strides = [1, 1]} : vector<16x128xf32> to vector<1x128xf32>
    %17 = vector.broadcast %15 : vector<16x1xf32> to vector<16x128xf32>
    %18 = vector.broadcast %16 : vector<1x128xf32> to vector<16x128xf32>
    %19 = arith.subf %17, %18 : vector<16x128xf32>
    %20 = math.absf %19 : vector<16x128xf32>
    %21 = vector.extract_strided_slice %13 {offsets = [0, 1], sizes = [16, 1], strides = [1, 1]} : vector<16x16xf32> to vector<16x1xf32>
    %22 = vector.extract_strided_slice %14 {offsets = [1, 0], sizes = [1, 128], strides = [1, 1]} : vector<16x128xf32> to vector<1x128xf32>
    %23 = vector.broadcast %21 : vector<16x1xf32> to vector<16x128xf32>
    %24 = vector.broadcast %22 : vector<1x128xf32> to vector<16x128xf32>
    %25 = arith.subf %23, %24 : vector<16x128xf32>
    %26 = math.absf %25 : vector<16x128xf32>
    %27 = arith.addf %20, %26 : vector<16x128xf32>
    %28 = vector.extract_strided_slice %13 {offsets = [0, 2], sizes = [16, 1], strides = [1, 1]} : vector<16x16xf32> to vector<16x1xf32>
    %29 = vector.extract_strided_slice %14 {offsets = [2, 0], sizes = [1, 128], strides = [1, 1]} : vector<16x128xf32> to vector<1x128xf32>
    %30 = vector.broadcast %28 : vector<16x1xf32> to vector<16x128xf32>
    %31 = vector.broadcast %29 : vector<1x128xf32> to vector<16x128xf32>
    %32 = arith.subf %30, %31 : vector<16x128xf32>
    %33 = math.absf %32 : vector<16x128xf32>
    %34 = arith.addf %27, %33 : vector<16x128xf32>
    %35 = vector.extract_strided_slice %13 {offsets = [0, 3], sizes = [16, 1], strides = [1, 1]} : vector<16x16xf32> to vector<16x1xf32>
    %36 = vector.extract_strided_slice %14 {offsets = [3, 0], sizes = [1, 128], strides = [1, 1]} : vector<16x128xf32> to vector<1x128xf32>
    %37 = vector.broadcast %35 : vector<16x1xf32> to vector<16x128xf32>
    %38 = vector.broadcast %36 : vector<1x128xf32> to vector<16x128xf32>
    %39 = arith.subf %37, %38 : vector<16x128xf32>
    %40 = math.absf %39 : vector<16x128xf32>
    %41 = arith.addf %34, %40 : vector<16x128xf32>
    %42 = vector.extract_strided_slice %13 {offsets = [0, 4], sizes = [16, 1], strides = [1, 1]} : vector<16x16xf32> to vector<16x1xf32>
    %43 = vector.extract_strided_slice %14 {offsets = [4, 0], sizes = [1, 128], strides = [1, 1]} : vector<16x128xf32> to vector<1x128xf32>
    %44 = vector.broadcast %42 : vector<16x1xf32> to vector<16x128xf32>
    %45 = vector.broadcast %43 : vector<1x128xf32> to vector<16x128xf32>
    %46 = arith.subf %44, %45 : vector<16x128xf32>
    %47 = math.absf %46 : vector<16x128xf32>
    %48 = arith.addf %41, %47 : vector<16x128xf32>
    %49 = vector.extract_strided_slice %13 {offsets = [0, 5], sizes = [16, 1], strides = [1, 1]} : vector<16x16xf32> to vector<16x1xf32>
    %50 = vector.extract_strided_slice %14 {offsets = [5, 0], sizes = [1, 128], strides = [1, 1]} : vector<16x128xf32> to vector<1x128xf32>
    %51 = vector.broadcast %49 : vector<16x1xf32> to vector<16x128xf32>
    %52 = vector.broadcast %50 : vector<1x128xf32> to vector<16x128xf32>
    %53 = arith.subf %51, %52 : vector<16x128xf32>
    %54 = math.absf %53 : vector<16x128xf32>
    %55 = arith.addf %48, %54 : vector<16x128xf32>
    %56 = arith.addf %12, %55 : vector<16x128xf32>
    %57 = vector.extract_strided_slice %13 {offsets = [0, 9], sizes = [16, 1], strides = [1, 1]} : vector<16x16xf32> to vector<16x1xf32>
    %58 = vector.extract_strided_slice %14 {offsets = [9, 0], sizes = [1, 128], strides = [1, 1]} : vector<16x128xf32> to vector<1x128xf32>
    %59 = vector.broadcast %57 : vector<16x1xf32> to vector<16x128xf32>
    %60 = vector.broadcast %58 : vector<1x128xf32> to vector<16x128xf32>
    %61 = arith.minimumf %59, %60 : vector<16x128xf32>
    %62 = vector.extract_strided_slice %13 {offsets = [0, 6], sizes = [16, 1], strides = [1, 1]} : vector<16x16xf32> to vector<16x1xf32>
    %63 = vector.extract_strided_slice %14 {offsets = [6, 0], sizes = [1, 128], strides = [1, 1]} : vector<16x128xf32> to vector<1x128xf32>
    %64 = vector.broadcast %62 : vector<16x1xf32> to vector<16x128xf32>
    %65 = vector.broadcast %63 : vector<1x128xf32> to vector<16x128xf32>
    %66 = arith.maximumf %64, %65 : vector<16x128xf32>
    %67 = arith.subf %61, %66 : vector<16x128xf32>
    %68 = vector.extract_strided_slice %13 {offsets = [0, 10], sizes = [16, 1], strides = [1, 1]} : vector<16x16xf32> to vector<16x1xf32>
    %69 = vector.extract_strided_slice %14 {offsets = [10, 0], sizes = [1, 128], strides = [1, 1]} : vector<16x128xf32> to vector<1x128xf32>
    %70 = vector.broadcast %68 : vector<16x1xf32> to vector<16x128xf32>
    %71 = vector.broadcast %69 : vector<1x128xf32> to vector<16x128xf32>
    %72 = arith.minimumf %70, %71 : vector<16x128xf32>
    %73 = vector.extract_strided_slice %13 {offsets = [0, 7], sizes = [16, 1], strides = [1, 1]} : vector<16x16xf32> to vector<16x1xf32>
    %74 = vector.extract_strided_slice %14 {offsets = [7, 0], sizes = [1, 128], strides = [1, 1]} : vector<16x128xf32> to vector<1x128xf32>
    %75 = vector.broadcast %73 : vector<16x1xf32> to vector<16x128xf32>
    %76 = vector.broadcast %74 : vector<1x128xf32> to vector<16x128xf32>
    %77 = arith.maximumf %75, %76 : vector<16x128xf32>
    %78 = arith.subf %72, %77 : vector<16x128xf32>
    %79 = vector.extract_strided_slice %13 {offsets = [0, 11], sizes = [16, 1], strides = [1, 1]} : vector<16x16xf32> to vector<16x1xf32>
    %80 = vector.extract_strided_slice %14 {offsets = [11, 0], sizes = [1, 128], strides = [1, 1]} : vector<16x128xf32> to vector<1x128xf32>
    %81 = vector.broadcast %79 : vector<16x1xf32> to vector<16x128xf32>
    %82 = vector.broadcast %80 : vector<1x128xf32> to vector<16x128xf32>
    %83 = arith.minimumf %81, %82 : vector<16x128xf32>
    %84 = vector.extract_strided_slice %13 {offsets = [0, 8], sizes = [16, 1], strides = [1, 1]} : vector<16x16xf32> to vector<16x1xf32>
    %85 = vector.extract_strided_slice %14 {offsets = [8, 0], sizes = [1, 128], strides = [1, 1]} : vector<16x128xf32> to vector<1x128xf32>
    %86 = vector.broadcast %84 : vector<16x1xf32> to vector<16x128xf32>
    %87 = vector.broadcast %85 : vector<1x128xf32> to vector<16x128xf32>
    %88 = arith.maximumf %86, %87 : vector<16x128xf32>
    %89 = arith.subf %83, %88 : vector<16x128xf32>
    %cst_9 = arith.constant 0.000000e+00 : f32
    %90 = vector.broadcast %cst_9 : f32 to vector<16x128xf32>
    %91 = arith.maximumf %67, %90 : vector<16x128xf32>
    %cst_10 = arith.constant 0.000000e+00 : f32
    %92 = vector.broadcast %cst_10 : f32 to vector<16x128xf32>
    %93 = arith.maximumf %78, %92 : vector<16x128xf32>
    %94 = arith.mulf %91, %93 : vector<16x128xf32>
    %cst_11 = arith.constant 0.000000e+00 : f32
    %95 = vector.broadcast %cst_11 : f32 to vector<16x128xf32>
    %96 = arith.maximumf %89, %95 : vector<16x128xf32>
    %97 = arith.mulf %94, %96 : vector<16x128xf32>
    %98 = vector.extract_strided_slice %13 {offsets = [0, 13], sizes = [16, 1], strides = [1, 1]} : vector<16x16xf32> to vector<16x1xf32>
    %99 = vector.extract_strided_slice %14 {offsets = [13, 0], sizes = [1, 128], strides = [1, 1]} : vector<16x128xf32> to vector<1x128xf32>
    %100 = vector.broadcast %98 : vector<16x1xf32> to vector<16x128xf32>
    %101 = vector.broadcast %99 : vector<1x128xf32> to vector<16x128xf32>
    %102 = arith.addf %100, %101 : vector<16x128xf32>
    %103 = arith.subf %102, %67 : vector<16x128xf32>
    %104 = vector.extract_strided_slice %13 {offsets = [0, 14], sizes = [16, 1], strides = [1, 1]} : vector<16x16xf32> to vector<16x1xf32>
    %105 = vector.extract_strided_slice %14 {offsets = [14, 0], sizes = [1, 128], strides = [1, 1]} : vector<16x128xf32> to vector<1x128xf32>
    %106 = vector.broadcast %104 : vector<16x1xf32> to vector<16x128xf32>
    %107 = vector.broadcast %105 : vector<1x128xf32> to vector<16x128xf32>
    %108 = arith.addf %106, %107 : vector<16x128xf32>
    %109 = arith.subf %108, %78 : vector<16x128xf32>
    %110 = arith.mulf %103, %109 : vector<16x128xf32>
    %111 = vector.extract_strided_slice %13 {offsets = [0, 15], sizes = [16, 1], strides = [1, 1]} : vector<16x16xf32> to vector<16x1xf32>
    %112 = vector.extract_strided_slice %14 {offsets = [15, 0], sizes = [1, 128], strides = [1, 1]} : vector<16x128xf32> to vector<1x128xf32>
    %113 = vector.broadcast %111 : vector<16x1xf32> to vector<16x128xf32>
    %114 = vector.broadcast %112 : vector<1x128xf32> to vector<16x128xf32>
    %115 = arith.addf %113, %114 : vector<16x128xf32>
    %116 = arith.subf %115, %89 : vector<16x128xf32>
    %117 = arith.mulf %110, %116 : vector<16x128xf32>
    %118 = vector.extract_strided_slice %13 {offsets = [0, 12], sizes = [16, 1], strides = [1, 1]} : vector<16x16xf32> to vector<16x1xf32>
    %119 = vector.extract_strided_slice %14 {offsets = [12, 0], sizes = [1, 128], strides = [1, 1]} : vector<16x128xf32> to vector<1x128xf32>
    %120 = vector.broadcast %118 : vector<16x1xf32> to vector<16x128xf32>
    %121 = vector.broadcast %119 : vector<1x128xf32> to vector<16x128xf32>
    %122 = arith.addf %120, %121 : vector<16x128xf32>
    %123 = arith.subf %122, %97 : vector<16x128xf32>
    %124 = tpu.reciprocal %123 {approx = true} : vector<16x128xf32> -> vector<16x128xf32>
    %125 = arith.mulf %97, %124 : vector<16x128xf32>
    %cst_12 = arith.constant 1.000000e+00 : f32
    %126 = vector.broadcast %cst_12 : f32 to vector<16x128xf32>
    %127 = arith.subf %126, %125 : vector<16x128xf32>
    %128 = tpu.reciprocal %117 {approx = true} : vector<16x128xf32> -> vector<16x128xf32>
    %129 = arith.mulf %123, %128 : vector<16x128xf32>
    %130 = arith.subf %127, %129 : vector<16x128xf32>
    %cst_13 = arith.constant 2.000000e+00 : f32
    %131 = vector.broadcast %cst_13 : f32 to vector<16x128xf32>
    %132 = arith.mulf %131, %130 : vector<16x128xf32>
    %133 = arith.addf %56, %132 : vector<16x128xf32>
    %c0_14 = arith.constant 0 : index
    %c0_15 = arith.constant 0 : index
    %134 = vector.load %arg5[%c0_14, %c0_15] : memref<16x128xf32, #tpu.memory_space<vmem>>, vector<16x128xf32>
    tpu.vector_store %arg5[%c0_14, %c0_15], %133 {strides = array<i32>} : memref<16x128xf32, #tpu.memory_space<vmem>>, vector<16x128xf32>,
    return
  }
  func.func @transform_0(%arg0: i32) -> (i32, i32) {
    %c0_i32 = arith.constant 0 : i32
    %c0_i32_0 = arith.constant 0 : i32
    return %arg0, %c0_i32 : i32, i32
  }
  func.func @transform_1(%arg0: i32) -> (i32, i32) {
    %c0_i32 = arith.constant 0 : i32
    %c0_i32_0 = arith.constant 0 : i32
    %c0_i32_1 = arith.constant 0 : i32
    return %c0_i32, %c0_i32_0 : i32, i32
  }
  func.func @transform_2(%arg0: i32) -> (i32, i32) {
    %c0_i32 = arith.constant 0 : i32
    %c0_i32_0 = arith.constant 0 : i32
    return %arg0, %c0_i32 : i32, i32
  }
  func.func @transform_3(%arg0: i32) -> (i32, i32) {
    %c0_i32 = arith.constant 0 : i32
    %c0_i32_0 = arith.constant 0 : i32
    %c0_i32_1 = arith.constant 0 : i32
    return %c0_i32, %c0_i32_0 : i32, i32
  }
  func.func @transform_4(%arg0: i32) -> (i32, i32) {
    %c0_i32 = arith.constant 0 : i32
    %c0_i32_0 = arith.constant 0 : i32
    return %arg0, %c0_i32 : i32, i32
  }
}

module attributes {stable_mosaic.version = 11 : i64} {
  func.func @_matcher_cost_kernel(%arg0: i32, %arg1: memref<16x32xf32, #tpu.memory_space<vmem>>, %arg2: memref<32x128xbf16, #tpu.memory_space<vmem>>, %arg3: memref<16x16xf32, #tpu.memory_space<vmem>>, %arg4: memref<16x128xf32, #tpu.memory_space<vmem>>, %arg5: memref<16x128xf32, #tpu.memory_space<vmem>>) attributes {dimension_semantics = [#tpu.dimension_semantics<parallel>], iteration_bounds = array<i64: 1>, scalar_prefetch = 0 : i64, scratch_operands = 0 : i64, tpu.core_type = #tpu.core_type<tc>, window_params = [{transform_indices = @transform_0, window_bounds = array<i64: 16, 32>}, {pipeline_mode = #tpu.pipeline_mode<synchronous>, transform_indices = @transform_1, window_bounds = array<i64: 32, 128>}, {transform_indices = @transform_2, window_bounds = array<i64: 16, 16>}, {pipeline_mode = #tpu.pipeline_mode<synchronous>, transform_indices = @transform_3, window_bounds = array<i64: 16, 128>}, {transform_indices = @transform_4, window_bounds = array<i64: 16, 128>}]} {
    %c0 = arith.constant 0 : index
    %c0_0 = arith.constant 0 : index
    %0 = vector.load %arg1[%c0, %c0_0] : memref<16x32xf32, #tpu.memory_space<vmem>>, vector<16x32xf32>
    %cst = arith.constant dense<0xFF800000> : vector<16xf32>
    %1 = vector.multi_reduction <maximumf>, %0, %cst [1] : vector<16x32xf32> to vector<16xf32>
    %2 = vector.shape_cast %1 : vector<16xf32> to vector<16x1xf32>
    %3 = vector.broadcast %2 : vector<16x1xf32> to vector<16x32xf32>
    %4 = arith.subf %0, %3 : vector<16x32xf32>
    %5 = math.exp %4 : vector<16x32xf32>
    %cst_1 = arith.constant dense<0.000000e+00> : vector<16xf32>
    %6 = vector.multi_reduction <add>, %5, %cst_1 [1] : vector<16x32xf32> to vector<16xf32>
    %7 = vector.shape_cast %6 : vector<16xf32> to vector<16x1xf32>
    %8 = vector.broadcast %7 : vector<16x1xf32> to vector<16x32xf32>
    %9 = arith.divf %5, %8 : vector<16x32xf32>
    %10 = arith.truncf %9 : vector<16x32xf32> to vector<16x32xbf16>
    %c0_2 = arith.constant 0 : index
    %c0_3 = arith.constant 0 : index
    %11 = vector.load %arg2[%c0_2, %c0_3] : memref<32x128xbf16, #tpu.memory_space<vmem>>, vector<32x128xbf16>
    %cst_4 = arith.constant dense<0.000000e+00> : vector<16x128xf32>
    %12 = tpu.matmul %10, %11, %cst_4 {dimension_numbers = #tpu.dot_dimension_numbers<[1], [0], [0], [1], [0, 0, 1, 1], [], []>} : vector<16x32xbf16>, vector<32x128xbf16>, vector<16x128xf32> -> vector<16x128xf32>
    %c0_5 = arith.constant 0 : index
    %c0_6 = arith.constant 0 : index
    %13 = vector.load %arg3[%c0_5, %c0_6] : memref<16x16xf32, #tpu.memory_space<vmem>>, vector<16x16xf32>
    %c0_7 = arith.constant 0 : index
    %c0_8 = arith.constant 0 : index
    %14 = vector.load %arg4[%c0_7, %c0_8] : memref<16x128xf32, #tpu.memory_space<vmem>>, vector<16x128xf32>
    %15 = vector.extract_strided_slice %13 {offsets = [0, 0], sizes = [16, 1], strides = [1, 1]} : vector<16x16xf32> to vector<16x1xf32>
    %16 = vector.extract_strided_slice %14 {offsets = [0, 0], sizes = [1, 128], strides = [1, 1]} : vector<16x128xf32> to vector<1x128xf32>
    %17 = vector.broadcast %15 : vector<16x1xf32> to vector<16x128xf32>
    %18 = vector.broadcast %16 : vector<1x128xf32> to vector<16x128xf32>
    %19 = arith.subf %17, %18 : vector<16x128xf32>
    %20 = math.absf %19 : vector<16x128xf32>
    %21 = vector.extract_strided_slice %13 {offsets = [0, 1], sizes = [16, 1], strides = [1, 1]} : vector<16x16xf32> to vector<16x1xf32>
    %22 = vector.extract_strided_slice %14 {offsets = [1, 0], sizes = [1, 128], strides = [1, 1]} : vector<16x128xf32> to vector<1x128xf32>
    %23 = vector.broadcast %21 : vector<16x1xf32> to vector<16x128xf32>
    %24 = vector.broadcast %22 : vector<1x128xf32> to vector<16x128xf32>
    %25 = arith.subf %23, %24 : vector<16x128xf32>
    %26 = math.absf %25 : vector<16x128xf32>
    %27 = arith.addf %20, %26 : vector<16x128xf32>
    %28 = vector.extract_strided_slice %13 {offsets = [0, 2], sizes = [16, 1], strides = [1, 1]} : vector<16x16xf32> to vector<16x1xf32>
    %29 = vector.extract_strided_slice %14 {offsets = [2, 0], sizes = [1, 128], strides = [1, 1]} : vector<16x128xf32> to vector<1x128xf32>
    %30 = vector.broadcast %28 : vector<16x1xf32> to vector<16x128xf32>
    %31 = vector.broadcast %29 : vector<1x128xf32> to vector<16x128xf32>
    %32 = arith.subf %30, %31 : vector<16x128xf32>
    %33 = math.absf %32 : vector<16x128xf32>
    %34 = arith.addf %27, %33 : vector<16x128xf32>
    %35 = vector.extract_strided_slice %13 {offsets = [0, 3], sizes = [16, 1], strides = [1, 1]} : vector<16x16xf32> to vector<16x1xf32>
    %36 = vector.extract_strided_slice %14 {offsets = [3, 0], sizes = [1, 128], strides = [1, 1]} : vector<16x128xf32> to vector<1x128xf32>
    %37 = vector.broadcast %35 : vector<16x1xf32> to vector<16x128xf32>
    %38 = vector.broadcast %36 : vector<1x128xf32> to vector<16x128xf32>
    %39 = arith.subf %37, %38 : vector<16x128xf32>
    %40 = math.absf %39 : vector<16x128xf32>
    %41 = arith.addf %34, %40 : vector<16x128xf32>
    %42 = vector.extract_strided_slice %13 {offsets = [0, 4], sizes = [16, 1], strides = [1, 1]} : vector<16x16xf32> to vector<16x1xf32>
    %43 = vector.extract_strided_slice %14 {offsets = [4, 0], sizes = [1, 128], strides = [1, 1]} : vector<16x128xf32> to vector<1x128xf32>
    %44 = vector.broadcast %42 : vector<16x1xf32> to vector<16x128xf32>
    %45 = vector.broadcast %43 : vector<1x128xf32> to vector<16x128xf32>
    %46 = arith.subf %44, %45 : vector<16x128xf32>
    %47 = math.absf %46 : vector<16x128xf32>
    %48 = arith.addf %41, %47 : vector<16x128xf32>
    %49 = vector.extract_strided_slice %13 {offsets = [0, 5], sizes = [16, 1], strides = [1, 1]} : vector<16x16xf32> to vector<16x1xf32>
    %50 = vector.extract_strided_slice %14 {offsets = [5, 0], sizes = [1, 128], strides = [1, 1]} : vector<16x128xf32> to vector<1x128xf32>
    %51 = vector.broadcast %49 : vector<16x1xf32> to vector<16x128xf32>
    %52 = vector.broadcast %50 : vector<1x128xf32> to vector<16x128xf32>
    %53 = arith.subf %51, %52 : vector<16x128xf32>
    %54 = math.absf %53 : vector<16x128xf32>
    %55 = arith.addf %48, %54 : vector<16x128xf32>
    %56 = arith.addf %12, %55 : vector<16x128xf32>
    %57 = vector.extract_strided_slice %13 {offsets = [0, 9], sizes = [16, 1], strides = [1, 1]} : vector<16x16xf32> to vector<16x1xf32>
    %58 = vector.extract_strided_slice %14 {offsets = [9, 0], sizes = [1, 128], strides = [1, 1]} : vector<16x128xf32> to vector<1x128xf32>
    %59 = vector.broadcast %57 : vector<16x1xf32> to vector<16x128xf32>
    %60 = vector.broadcast %58 : vector<1x128xf32> to vector<16x128xf32>
    %61 = arith.minimumf %59, %60 : vector<16x128xf32>
    %62 = vector.extract_strided_slice %13 {offsets = [0, 6], sizes = [16, 1], strides = [1, 1]} : vector<16x16xf32> to vector<16x1xf32>
    %63 = vector.extract_strided_slice %14 {offsets = [6, 0], sizes = [1, 128], strides = [1, 1]} : vector<16x128xf32> to vector<1x128xf32>
    %64 = vector.broadcast %62 : vector<16x1xf32> to vector<16x128xf32>
    %65 = vector.broadcast %63 : vector<1x128xf32> to vector<16x128xf32>
    %66 = arith.maximumf %64, %65 : vector<16x128xf32>
    %67 = arith.subf %61, %66 : vector<16x128xf32>
    %68 = vector.extract_strided_slice %13 {offsets = [0, 10], sizes = [16, 1], strides = [1, 1]} : vector<16x16xf32> to vector<16x1xf32>
    %69 = vector.extract_strided_slice %14 {offsets = [10, 0], sizes = [1, 128], strides = [1, 1]} : vector<16x128xf32> to vector<1x128xf32>
    %70 = vector.broadcast %68 : vector<16x1xf32> to vector<16x128xf32>
    %71 = vector.broadcast %69 : vector<1x128xf32> to vector<16x128xf32>
    %72 = arith.minimumf %70, %71 : vector<16x128xf32>
    %73 = vector.extract_strided_slice %13 {offsets = [0, 7], sizes = [16, 1], strides = [1, 1]} : vector<16x16xf32> to vector<16x1xf32>
    %74 = vector.extract_strided_slice %14 {offsets = [7, 0], sizes = [1, 128], strides = [1, 1]} : vector<16x128xf32> to vector<1x128xf32>
    %75 = vector.broadcast %73 : vector<16x1xf32> to vector<16x128xf32>
    %76 = vector.broadcast %74 : vector<1x128xf32> to vector<16x128xf32>
    %77 = arith.maximumf %75, %76 : vector<16x128xf32>
    %78 = arith.subf %72, %77 : vector<16x128xf32>
    %79 = vector.extract_strided_slice %13 {offsets = [0, 11], sizes = [16, 1], strides = [1, 1]} : vector<16x16xf32> to vector<16x1xf32>
    %80 = vector.extract_strided_slice %14 {offsets = [11, 0], sizes = [1, 128], strides = [1, 1]} : vector<16x128xf32> to vector<1x128xf32>
    %81 = vector.broadcast %79 : vector<16x1xf32> to vector<16x128xf32>
    %82 = vector.broadcast %80 : vector<1x128xf32> to vector<16x128xf32>
    %83 = arith.minimumf %81, %82 : vector<16x128xf32>
    %84 = vector.extract_strided_slice %13 {offsets = [0, 8], sizes = [16, 1], strides = [1, 1]} : vector<16x16xf32> to vector<16x1xf32>
    %85 = vector.extract_strided_slice %14 {offsets = [8, 0], sizes = [1, 128], strides = [1, 1]} : vector<16x128xf32> to vector<1x128xf32>
    %86 = vector.broadcast %84 : vector<16x1xf32> to vector<16x128xf32>
    %87 = vector.broadcast %85 : vector<1x128xf32> to vector<16x128xf32>
    %88 = arith.maximumf %86, %87 : vector<16x128xf32>
    %89 = arith.subf %83, %88 : vector<16x128xf32>
    %cst_9 = arith.constant 0.000000e+00 : f32
    %90 = vector.broadcast %cst_9 : f32 to vector<16x128xf32>
    %91 = arith.maximumf %67, %90 : vector<16x128xf32>
    %cst_10 = arith.constant 0.000000e+00 : f32
    %92 = vector.broadcast %cst_10 : f32 to vector<16x128xf32>
    %93 = arith.maximumf %78, %92 : vector<16x128xf32>
    %94 = arith.mulf %91, %93 : vector<16x128xf32>
    %cst_11 = arith.constant 0.000000e+00 : f32
    %95 = vector.broadcast %cst_11 : f32 to vector<16x128xf32>
    %96 = arith.maximumf %89, %95 : vector<16x128xf32>
    %97 = arith.mulf %94, %96 : vector<16x128xf32>
    %98 = vector.extract_strided_slice %13 {offsets = [0, 13], sizes = [16, 1], strides = [1, 1]} : vector<16x16xf32> to vector<16x1xf32>
    %99 = vector.extract_strided_slice %14 {offsets = [13, 0], sizes = [1, 128], strides = [1, 1]} : vector<16x128xf32> to vector<1x128xf32>
    %100 = vector.broadcast %98 : vector<16x1xf32> to vector<16x128xf32>
    %101 = vector.broadcast %99 : vector<1x128xf32> to vector<16x128xf32>
    %102 = arith.addf %100, %101 : vector<16x128xf32>
    %103 = arith.subf %102, %67 : vector<16x128xf32>
    %104 = vector.extract_strided_slice %13 {offsets = [0, 14], sizes = [16, 1], strides = [1, 1]} : vector<16x16xf32> to vector<16x1xf32>
    %105 = vector.extract_strided_slice %14 {offsets = [14, 0], sizes = [1, 128], strides = [1, 1]} : vector<16x128xf32> to vector<1x128xf32>
    %106 = vector.broadcast %104 : vector<16x1xf32> to vector<16x128xf32>
    %107 = vector.broadcast %105 : vector<1x128xf32> to vector<16x128xf32>
    %108 = arith.addf %106, %107 : vector<16x128xf32>
    %109 = arith.subf %108, %78 : vector<16x128xf32>
    %110 = arith.mulf %103, %109 : vector<16x128xf32>
    %111 = vector.extract_strided_slice %13 {offsets = [0, 15], sizes = [16, 1], strides = [1, 1]} : vector<16x16xf32> to vector<16x1xf32>
    %112 = vector.extract_strided_slice %14 {offsets = [15, 0], sizes = [1, 128], strides = [1, 1]} : vector<16x128xf32> to vector<1x128xf32>
    %113 = vector.broadcast %111 : vector<16x1xf32> to vector<16x128xf32>
    %114 = vector.broadcast %112 : vector<1x128xf32> to vector<16x128xf32>
    %115 = arith.addf %113, %114 : vector<16x128xf32>
    %116 = arith.subf %115, %89 : vector<16x128xf32>
    %117 = arith.mulf %110, %116 : vector<16x128xf32>
    %118 = vector.extract_strided_slice %13 {offsets = [0, 12], sizes = [16, 1], strides = [1, 1]} : vector<16x16xf32> to vector<16x1xf32>
    %119 = vector.extract_strided_slice %14 {offsets = [12, 0], sizes = [1, 128], strides = [1, 1]} : vector<16x128xf32> to vector<1x128xf32>
    %120 = vector.broadcast %118 : vector<16x1xf32> to vector<16x128xf32>
    %121 = vector.broadcast %119 : vector<1x128xf32> to vector<16x128xf32>
    %122 = arith.addf %120, %121 : vector<16x128xf32>
    %123 = arith.subf %122, %97 : vector<16x128xf32>
    %124 = tpu.reciprocal %123 {approx = true} : vector<16x128xf32> -> vector<16x128xf32>
    %125 = arith.mulf %97, %124 : vector<16x128xf32>
    %cst_12 = arith.constant 1.000000e+00 : f32
    %126 = vector.broadcast %cst_12 : f32 to vector<16x128xf32>
    %127 = arith.subf %126, %125 : vector<16x128xf32>
    %128 = tpu.reciprocal %117 {approx = true} : vector<16x128xf32> -> vector<16x128xf32>
    %129 = arith.mulf %123, %128 : vector<16x128xf32>
    %130 = arith.subf %127, %129 : vector<16x128xf32>
    %cst_13 = arith.constant 2.000000e+00 : f32
    %131 = vector.broadcast %cst_13 : f32 to vector<16x128xf32>
    %132 = arith.mulf %131, %130 : vector<16x128xf32>
    %133 = arith.addf %56, %132 : vector<16x128xf32>
    %c0_14 = arith.constant 0 : index
    %c0_15 = arith.constant 0 : index
    %134 = vector.load %arg5[%c0_14, %c0_15] : memref<16x128xf32, #tpu.memory_space<vmem>>, vector<16x128xf32>
    tpu.vector_store %arg5[%c0_14, %c0_15], %133 {strides = array<i32>} : memref<16x128xf32, #tpu.memory_space<vmem>>, vector<16x128xf32>,
    return
  }
  func.func @transform_0(%arg0: i32) -> (i32, i32) {
    %c0_i32 = arith.constant 0 : i32
    %c0_i32_0 = arith.constant 0 : i32
    return %arg0, %c0_i32 : i32, i32
  }
  func.func @transform_1(%arg0: i32) -> (i32, i32) {
    %c0_i32 = arith.constant 0 : i32
    %c0_i32_0 = arith.constant 0 : i32
    %c0_i32_1 = arith.constant 0 : i32
    return %c0_i32, %c0_i32_0 : i32, i32
  }
  func.func @transform_2(%arg0: i32) -> (i32, i32) {
    %c0_i32 = arith.constant 0 : i32
    %c0_i32_0 = arith.constant 0 : i32
    return %arg0, %c0_i32 : i32, i32
  }
  func.func @transform_3(%arg0: i32) -> (i32, i32) {
    %c0_i32 = arith.constant 0 : i32
    %c0_i32_0 = arith.constant 0 : i32
    %c0_i32_1 = arith.constant 0 : i32
    return %c0_i32, %c0_i32_0 : i32, i32
  }
  func.func @transform_4(%arg0: i32) -> (i32, i32) {
    %c0_i32 = arith.constant 0 : i32
    %c0_i32_0 = arith.constant 0 : i32
    return %arg0, %c0_i32 : i32, i32
  }
}

</mosaic_0001>

<llo_original>
// kernel: tpu_custom_call.1
$region0: #{tpu_custom_call.1}
  #allocation0 [shape = 'u32[]', space=smem, size = 0x4, offset = 0x4, fixed_abs, tag = 'smem constant byte address 0x4 - core index']
  #allocation1 [shape = 'u32[144,128]{1,0:T(1,128)}', space=vmem, size = 0x12000, scoped, tag = 'internal scratch']
  %s0 = inlined_call_operand.hbm [shape: f32[16,32], index: 0, kind: input, shape index: {}]
  %s1 = inlined_call_operand.hbm [shape: bf16[32,128], index: 1, kind: input, shape index: {}]
  %s2 = inlined_call_operand.hbm [shape: f32[16,16], index: 2, kind: input, shape index: {}]
  %s3 = inlined_call_operand.hbm [shape: f32[16,128], index: 3, kind: input, shape index: {}]
  %s4 = inlined_call_operand.hbm [shape: f32[16,128], index: 4, kind: output, shape index: {}]
  %s5 = sld [smem:[#allocation0]]
  $region42: #{tpu_custom_call.1} parent=0
    _
  %s7 = ssub.s32 1, %s5
  %s8 = scalar_select 0, %s7, %s5
  $region1: #{tpu_custom_call.1} parent=0
    #allocation2 [shape = 'u8[8192]{0}', space=vmem, size = 0x2000, scoped, tag = 'input window, operand 0, single buffered']
    #allocation3 [shape = 's32[1]{0}', space=sflag, size = 0x4, scoped, tag = 'scoped memory for tpu_custom_call.1']
    #allocation4 [shape = 's32[1]{0}', space=sflag, size = 0x4, scoped, tag = 'scoped memory for tpu_custom_call.1']
    #allocation5 [shape = 'u8[8192]{0}', space=vmem, size = 0x2000, scoped, tag = 'input window, operand 1, single buffered']
    #allocation6 [shape = 's32[1]{0}', space=sflag, size = 0x4, scoped, tag = 'scoped memory for tpu_custom_call.1']
    #allocation7 [shape = 'u8[8192]{0}', space=vmem, size = 0x2000, scoped, tag = 'input window, operand 2, single buffered']
    #allocation8 [shape = 'u8[8192]{0}', space=vmem, size = 0x2000, scoped, tag = 'input window, operand 3, single buffered']
    #allocation9 [shape = 's32[1]{0}', space=sflag, size = 0x4, scoped, tag = 'scoped memory for tpu_custom_call.1']
    #allocation10 [shape = 'u8[8192]{0}', space=vmem, size = 0x2000, scoped, tag = 'output window, operand 0, single buffered']
    %9 = vsyncpa [#allocation3], 0
    %10 = vsyncpa [#allocation6], 0
    %11 = vsyncpa [#allocation9], 0
    %12 = vsyncpa [#allocation4], 0
    // Predicated region
    $region2: #{tpu_custom_call.1} parent=1 // pred_check
      _
    $region3: #{tpu_custom_call.1} parent=1 // pred_check_branch
      %14 = sbr.rel (0) target = $region5
    $region4: #{tpu_custom_call.1} parent=1 // pred_region
      %s16 = ssub.s32 256, 256
      %17 = vsyncadd [#allocation3], %s16
      %s18 = sshll.u32 [#allocation2], 4
      %s19 = int_to_ptr.vmem [resolvable:$true] %s18
      %24 = dma.hbm_to_vmem [thread:$0]  %s0, 256, %s19, [#allocation3], 128, 128, 8
    $region5: #{tpu_custom_call.1} parent=1 // pred_fallthru
      _
    // Predicated region
    $region6: #{tpu_custom_call.1} parent=1 // pred_check
      _
    $region7: #{tpu_custom_call.1} parent=1 // pred_check_branch
      %26 = sbr.rel (0) target = $region9
    $region8: #{tpu_custom_call.1} parent=1 // pred_region
      %s28 = ssub.s32 256, 256
      %29 = vsyncadd [#allocation6], %s28
      %s30 = sshll.u32 [#allocation5], 4
      %s31 = int_to_ptr.vmem [resolvable:$true] %s30
      %36 = dma.hbm_to_vmem [thread:$0]  %s1, 256, %s31, [#allocation6], 64, 64, 4
    $region9: #{tpu_custom_call.1} parent=1 // pred_fallthru
      _
    // Predicated region
    $region10: #{tpu_custom_call.1} parent=1 // pred_check
      _
    $region11: #{tpu_custom_call.1} parent=1 // pred_check_branch
      %38 = sbr.rel (0) target = $region13
    $region12: #{tpu_custom_call.1} parent=1 // pred_region
      %s40 = ssub.s32 256, 256
      %41 = vsyncadd [#allocation6], %s40
      %s42 = sshll.u32 [#allocation7], 4
      %s43 = int_to_ptr.vmem [resolvable:$true] %s42
      %48 = dma.hbm_to_vmem [thread:$0]  %s2, 256, %s43, [#allocation6], 128, 128, 8
    $region13: #{tpu_custom_call.1} parent=1 // pred_fallthru
      _
    // Predicated region
    $region14: #{tpu_custom_call.1} parent=1 // pred_check
      _
    $region15: #{tpu_custom_call.1} parent=1 // pred_check_branch
      %50 = sbr.rel (0) target = $region17
    $region16: #{tpu_custom_call.1} parent=1 // pred_region
      %s52 = ssub.s32 256, 256
      %53 = vsyncadd [#allocation9], %s52
      %s54 = sshll.u32 [#allocation8], 4
      %s55 = int_to_ptr.vmem [resolvable:$true] %s54
      %60 = dma.hbm_to_vmem [thread:$0]  %s3, 256, %s55, [#allocation9], 128, 128, 8
    $region17: #{tpu_custom_call.1} parent=1 // pred_fallthru
      _
    // Predicated region
    $region18: #{tpu_custom_call.1} parent=1 // pred_check
      _
    $region19: #{tpu_custom_call.1} parent=1 // pred_check_branch
      %62 = sbr.rel (0) target = $region21
    $region20: #{tpu_custom_call.1} parent=1 // pred_region
      %63 = dma.done [#allocation3], 256
    $region21: #{tpu_custom_call.1} parent=1 // pred_fallthru
      _
    // Predicated region
    $region22: #{tpu_custom_call.1} parent=1 // pred_check
      _
    $region23: #{tpu_custom_call.1} parent=1 // pred_check_branch
      %65 = sbr.rel (0) target = $region25
    $region24: #{tpu_custom_call.1} parent=1 // pred_region
      %66 = dma.done [#allocation6], 256
    $region25: #{tpu_custom_call.1} parent=1 // pred_fallthru
      _
    // Predicated region
    $region26: #{tpu_custom_call.1} parent=1 // pred_check
      _
    $region27: #{tpu_custom_call.1} parent=1 // pred_check_branch
      %68 = sbr.rel (0) target = $region29
    $region28: #{tpu_custom_call.1} parent=1 // pred_region
      %69 = dma.done [#allocation6], 256
    $region29: #{tpu_custom_call.1} parent=1 // pred_fallthru
      _
    // Predicated region
    $region30: #{tpu_custom_call.1} parent=1 // pred_check
      _
    $region31: #{tpu_custom_call.1} parent=1 // pred_check_branch
      %71 = sbr.rel (0) target = $region33
    $region32: #{tpu_custom_call.1} parent=1 // pred_region
      %72 = dma.done [#allocation9], 256
    $region33: #{tpu_custom_call.1} parent=1 // pred_fallthru
      _
    %v74 = vld [vmem:[#allocation2] sm:$0xff]
    %v75 = vld [vmem:[#allocation2 + $0x8] sm:$0xff]
    %vm76 = vcmask 261120
    %v77 = vsel %vm76, %v74, -inf
    %78 = vmax.xlane.f32.xlu0 %v77
    %v79 = vpop.xlane.xlu0 %78
    %v80 = vsel %vm76, %v75, -inf
    %81 = vmax.xlane.f32.xlu0 %v80
    %v82 = vpop.xlane.xlu0 %81
    %v83 = vsub.f32 %v74, %v79
    %v84 = vsub.f32 %v75, %v82
    %v85 = vmul.f32 %v83, 1.442695
    %v86 = vpow.pop %v85
    %v87 = vmul.f32 %v84, 1.442695
    %v88 = vpow.pop %v87
    %v89 = vsel %vm76, %v86, 0.0
    %90 = vadd.xlane.f32.xlu0 %v89
    %v91 = vpop.xlane.xlu0 %90
    %v92 = vsel %vm76, %v88, 0.0
    %93 = vadd.xlane.f32.xlu0 %v92
    %v94 = vpop.xlane.xlu0 %93
    %v95 = vrcp.pop %v91
    %v96 = vmul.f32 %v86, %v95
    %v97 = vrcp.pop %v94
    %v98 = vmul.f32 %v88, %v97
    %v99 = vpack.c.bf16 %v98, %v96
    %v100 = vld [vmem:[#allocation5] sm:$0xf]
    %v101 = vld [vmem:[#allocation5 + $0x4] sm:$0xf]
    %v102 = vld [vmem:[#allocation5 + $0x8] sm:$0xf]
    %v103 = vld [vmem:[#allocation5 + $0xc] sm:$0xf]
    %v104 = vld [vmem:[#allocation7] sm:$0xff]
    %v105 = vld [vmem:[#allocation7 + $0x8] sm:$0xff]
    %v106 = vld [vmem:[#allocation8] sm:$0xff]
    %v107 = vld [vmem:[#allocation8 + $0x8] sm:$0xff]
    %109 = vset.pattern.permute.xlu0 0
    %110 = vperm.xlu0 %109, %v104
    %v111 = vpop.permute.xlu0 %110
    %114 = vset.pattern.permute.xlu0 0
    %115 = vperm.xlu0 %114, %v105
    %v116 = vpop.permute.xlu0 %115
    %v118 = vlaneseq
    %v119 = vshrl.u32 %v118, 7
    %v120 = vsub.s32 0, %v119
    %v121 = vrot.slane %v106, %v120
    %v122 = vsub.f32 %v111, %v121
    %v123 = vsub.f32 %v116, %v121
    %v124 = vand.u32 2147483647, %v122
    %v125 = vand.u32 2147483647, %v123
    %126 = vset.pattern.permute.xlu0 1
    %127 = vperm.xlu0 %126, %v104
    %v128 = vpop.permute.xlu0 %127
    %130 = vset.pattern.permute.xlu0 1
    %131 = vperm.xlu0 %130, %v105
    %v132 = vpop.permute.xlu0 %131
    %v134 = vlaneseq
    %v135 = vshrl.u32 %v134, 7
    %v136 = vsub.s32 1, %v135
    %v137 = vrot.slane %v106, %v136
    %v138 = vsub.f32 %v128, %v137
    %v139 = vsub.f32 %v132, %v137
    %v140 = vand.u32 2147483647, %v138
    %v141 = vand.u32 2147483647, %v139
    %v142 = vadd.f32 %v124, %v140
    %v143 = vadd.f32 %v125, %v141
    %144 = vset.pattern.permute.xlu0 2
    %145 = vperm.xlu0 %144, %v104
    %v146 = vpop.permute.xlu0 %145
    %148 = vset.pattern.permute.xlu0 2
    %149 = vperm.xlu0 %148, %v105
    %v150 = vpop.permute.xlu0 %149
    %v152 = vlaneseq
    %v153 = vshrl.u32 %v152, 7
    %v154 = vsub.s32 2, %v153
    %v155 = vrot.slane %v106, %v154
    %v156 = vsub.f32 %v146, %v155
    %v157 = vsub.f32 %v150, %v155
    %v158 = vand.u32 2147483647, %v156
    %v159 = vand.u32 2147483647, %v157
    %v160 = vadd.f32 %v142, %v158
    %v161 = vadd.f32 %v143, %v159
    %162 = vset.pattern.permute.xlu0 3
    %163 = vperm.xlu0 %162, %v104
    %v164 = vpop.permute.xlu0 %163
    %166 = vset.pattern.permute.xlu0 3
    %167 = vperm.xlu0 %166, %v105
    %v168 = vpop.permute.xlu0 %167
    %v170 = vlaneseq
    %v171 = vshrl.u32 %v170, 7
    %v172 = vsub.s32 3, %v171
    %v173 = vrot.slane %v106, %v172
    %v174 = vsub.f32 %v164, %v173
    %v175 = vsub.f32 %v168, %v173
    %v176 = vand.u32 2147483647, %v174
    %v177 = vand.u32 2147483647, %v175
    %v178 = vadd.f32 %v160, %v176
    %v179 = vadd.f32 %v161, %v177
    %180 = vset.pattern.permute.xlu0 4
    %181 = vperm.xlu0 %180, %v104
    %v182 = vpop.permute.xlu0 %181
    %184 = vset.pattern.permute.xlu0 4
    %185 = vperm.xlu0 %184, %v105
    %v186 = vpop.permute.xlu0 %185
    %v188 = vlaneseq
    %v189 = vshrl.u32 %v188, 7
    %v190 = vsub.s32 4, %v189
    %v191 = vrot.slane %v106, %v190
    %v192 = vsub.f32 %v182, %v191
    %v193 = vsub.f32 %v186, %v191
    %v194 = vand.u32 2147483647, %v192
    %v195 = vand.u32 2147483647, %v193
    %v196 = vadd.f32 %v178, %v194
    %v197 = vadd.f32 %v179, %v195
    %198 = vset.pattern.permute.xlu0 5
    %199 = vperm.xlu0 %198, %v104
    %v200 = vpop.permute.xlu0 %199
    %202 = vset.pattern.permute.xlu0 5
    %203 = vperm.xlu0 %202, %v105
    %v204 = vpop.permute.xlu0 %203
    %v206 = vlaneseq
    %v207 = vshrl.u32 %v206, 7
    %v208 = vsub.s32 5, %v207
    %v209 = vrot.slane %v106, %v208
    %v210 = vsub.f32 %v200, %v209
    %v211 = vsub.f32 %v204, %v209
    %v212 = vand.u32 2147483647, %v210
    %v213 = vand.u32 2147483647, %v211
    %v214 = vadd.f32 %v196, %v212
    %v215 = vadd.f32 %v197, %v213
    %v220 = vunpack.c.l.b16 %v100
    %v221 = vunpack.c.l.b16 %v101
    %v222 = vunpack.c.l.b16 %v102
    %v223 = vunpack.c.l.b16 %v103
    %v224 = vpack.c.b16 %v221, %v220
    %v225 = vpack.c.b16 %v223, %v222
    %v229 = vsel %vm76, %v99, 0
    %231 = vmatprep.subr.bf16.mxu0 0
    %232 = vmatpush1.bf16.msra.mxu0 %v224
    %233 = vmatprep.subr.bf16.mxu0 0
    %234 = vmatpush1.bf16.msra.mxu0 %v225
    %235 = vmatprep.subr.bf16.mxu0 0
    %236 = vmatpush1.bf16.msra.mxu0 0
    %237 = vmatprep.subr.bf16.mxu0 0
    %238 = vmatpush1.bf16.msra.mxu0 0
    %239 = vmatprep.subr.bf16.mxu0 0
    %240 = vmatpush1.bf16.msra.mxu0 0
    %241 = vmatprep.subr.bf16.mxu0 0
    %242 = vmatpush1.bf16.msra.mxu0 0
    %243 = vmatprep.subr.bf16.mxu0 0
    %244 = vmatpush1.bf16.msra.mxu0 0
    %245 = vmatprep.subr.bf16.mxu0 0
    %246 = vmatpush1.bf16.msra.mxu0 0
    %247 = vmatprep.subr.bf16.mxu0 0
    %248 = vmatpush1.bf16.msra.mxu0 0
    %249 = vmatprep.subr.bf16.mxu0 0
    %250 = vmatpush1.bf16.msra.mxu0 0
    %251 = vmatprep.subr.bf16.mxu0 0
    %252 = vmatpush1.bf16.msra.mxu0 0
    %253 = vmatprep.subr.bf16.mxu0 0
    %254 = vmatpush1.bf16.msra.mxu0 0
    %255 = vmatprep.subr.bf16.mxu0 0
    %256 = vmatpush1.bf16.msra.mxu0 0
    %257 = vmatprep.subr.bf16.mxu0 0
    %258 = vmatpush1.bf16.msra.mxu0 0
    %259 = vmatprep.subr.bf16.mxu0 0
    %260 = vmatpush1.bf16.msra.mxu0 0
    %261 = vmatprep.subr.bf16.mxu0 0
    %262 = vmatpush1.bf16.msra.mxu0 0
    %263 = vmatprep.mubr.bf16.mxu0 0
    %264 = vmatmul.mubr.bf16.gmra.mrb[0].mxu0 %v229
    %v265 = vpop.f32.mrb[0].mxu0
    %v266 = vadd.f32 %v214, %v265
    %v267 = vpop.f32.mrb[0].mxu0
    %v268 = vpop.f32.mrb[0].mxu0
    %v269 = vadd.f32 %v215, %v268
    %v270 = vpop.f32.mrb[0].mxu0
    %271 = vdwg.mxu0
    %272 = vset.pattern.permute.xlu0 9
    %273 = vperm.xlu0 %272, %v104
    %v274 = vpop.permute.xlu0 %273
    %276 = vset.pattern.permute.xlu0 9
    %277 = vperm.xlu0 %276, %v105
    %v278 = vpop.permute.xlu0 %277
    %v280 = vlaneseq
    %v281 = vshrl.u32 %v280, 7
    %v282 = vsub.s32 1, %v281
    %v283 = vrot.slane %v107, %v282
    %v284 = vmin.f32 %v274, %v283
    %v285 = vmin.f32 %v278, %v283
    %286 = vset.pattern.permute.xlu0 6
    %287 = vperm.xlu0 %286, %v104
    %v288 = vpop.permute.xlu0 %287
    %290 = vset.pattern.permute.xlu0 6
    %291 = vperm.xlu0 %290, %v105
    %v292 = vpop.permute.xlu0 %291
    %v294 = vlaneseq
    %v295 = vshrl.u32 %v294, 7
    %v296 = vsub.s32 6, %v295
    %v297 = vrot.slane %v106, %v296
    %v298 = vmax.f32 %v288, %v297
    %v299 = vmax.f32 %v292, %v297
    %v300 = vsub.f32 %v284, %v298
    %v301 = vsub.f32 %v285, %v299
    %302 = vset.pattern.permute.xlu0 10
    %303 = vperm.xlu0 %302, %v104
    %v304 = vpop.permute.xlu0 %303
    %306 = vset.pattern.permute.xlu0 10
    %307 = vperm.xlu0 %306, %v105
    %v308 = vpop.permute.xlu0 %307
    %v310 = vlaneseq
    %v311 = vshrl.u32 %v310, 7
    %v312 = vsub.s32 2, %v311
    %v313 = vrot.slane %v107, %v312
    %v314 = vmin.f32 %v304, %v313
    %v315 = vmin.f32 %v308, %v313
    %316 = vset.pattern.permute.xlu0 7
    %317 = vperm.xlu0 %316, %v104
    %v318 = vpop.permute.xlu0 %317
    %320 = vset.pattern.permute.xlu0 7
    %321 = vperm.xlu0 %320, %v105
    %v322 = vpop.permute.xlu0 %321
    %v324 = vlaneseq
    %v325 = vshrl.u32 %v324, 7
    %v326 = vsub.s32 7, %v325
    %v327 = vrot.slane %v106, %v326
    %v328 = vmax.f32 %v318, %v327
    %v329 = vmax.f32 %v322, %v327
    %v330 = vsub.f32 %v314, %v328
    %v331 = vsub.f32 %v315, %v329
    %332 = vset.pattern.permute.xlu0 11
    %333 = vperm.xlu0 %332, %v104
    %v334 = vpop.permute.xlu0 %333
    %336 = vset.pattern.permute.xlu0 11
    %337 = vperm.xlu0 %336, %v105
    %v338 = vpop.permute.xlu0 %337
    %v340 = vlaneseq
    %v341 = vshrl.u32 %v340, 7
    %v342 = vsub.s32 3, %v341
    %v343 = vrot.slane %v107, %v342
    %v344 = vmin.f32 %v334, %v343
    %v345 = vmin.f32 %v338, %v343
    %346 = vset.pattern.permute.xlu0 8
    %347 = vperm.xlu0 %346, %v104
    %v348 = vpop.permute.xlu0 %347
    %350 = vset.pattern.permute.xlu0 8
    %351 = vperm.xlu0 %350, %v105
    %v352 = vpop.permute.xlu0 %351
    %v354 = vlaneseq
    %v355 = vshrl.u32 %v354, 7
    %v356 = vsub.s32 0, %v355
    %v357 = vrot.slane %v107, %v356
    %v358 = vmax.f32 %v348, %v357
    %v359 = vmax.f32 %v352, %v357
    %v360 = vsub.f32 %v344, %v358
    %v361 = vsub.f32 %v345, %v359
    %v362 = vmax.f32 %v300, 0.0
    %v363 = vmax.f32 %v301, 0.0
    %v364 = vmax.f32 %v330, 0.0
    %v365 = vmax.f32 %v331, 0.0
    %v366 = vmul.f32 %v362, %v364
    %v367 = vmul.f32 %v363, %v365
    %v368 = vmax.f32 %v360, 0.0
    %v369 = vmax.f32 %v361, 0.0
    %v370 = vmul.f32 %v366, %v368
    %v371 = vmul.f32 %v367, %v369
    %372 = vset.pattern.permute.xlu0 13
    %373 = vperm.xlu0 %372, %v104
    %v374 = vpop.permute.xlu0 %373
    %376 = vset.pattern.permute.xlu0 13
    %377 = vperm.xlu0 %376, %v105
    %v378 = vpop.permute.xlu0 %377
    %v380 = vlaneseq
    %v381 = vshrl.u32 %v380, 7
    %v382 = vsub.s32 5, %v381
    %v383 = vrot.slane %v107, %v382
    %v384 = vadd.f32 %v374, %v383
    %v385 = vadd.f32 %v378, %v383
    %v386 = vsub.f32 %v384, %v300
    %v387 = vsub.f32 %v385, %v301
    %388 = vset.pattern.permute.xlu0 14
    %389 = vperm.xlu0 %388, %v104
    %v390 = vpop.permute.xlu0 %389
    %392 = vset.pattern.permute.xlu0 14
    %393 = vperm.xlu0 %392, %v105
    %v394 = vpop.permute.xlu0 %393
    %v396 = vlaneseq
    %v397 = vshrl.u32 %v396, 7
    %v398 = vsub.s32 6, %v397
    %v399 = vrot.slane %v107, %v398
    %v400 = vadd.f32 %v390, %v399
    %v401 = vadd.f32 %v394, %v399
    %v402 = vsub.f32 %v400, %v330
    %v403 = vsub.f32 %v401, %v331
    %v404 = vmul.f32 %v386, %v402
    %v405 = vmul.f32 %v387, %v403
    %406 = vset.pattern.permute.xlu0 15
    %407 = vperm.xlu0 %406, %v104
    %v408 = vpop.permute.xlu0 %407
    %410 = vset.pattern.permute.xlu0 15
    %411 = vperm.xlu0 %410, %v105
    %v412 = vpop.permute.xlu0 %411
    %v414 = vlaneseq
    %v415 = vshrl.u32 %v414, 7
    %v416 = vsub.s32 7, %v415
    %v417 = vrot.slane %v107, %v416
    %v418 = vadd.f32 %v408, %v417
    %v419 = vadd.f32 %v412, %v417
    %v420 = vsub.f32 %v418, %v360
    %v421 = vsub.f32 %v419, %v361
    %v422 = vmul.f32 %v404, %v420
    %v423 = vmul.f32 %v405, %v421
    %424 = vset.pattern.permute.xlu0 12
    %425 = vperm.xlu0 %424, %v104
    %v426 = vpop.permute.xlu0 %425
    %428 = vset.pattern.permute.xlu0 12
    %429 = vperm.xlu0 %428, %v105
    %v430 = vpop.permute.xlu0 %429
    %v432 = vlaneseq
    %v433 = vshrl.u32 %v432, 7
    %v434 = vsub.s32 4, %v433
    %v435 = vrot.slane %v107, %v434
    %v436 = vadd.f32 %v426, %v435
    %v437 = vadd.f32 %v430, %v435
    %v438 = vsub.f32 %v436, %v370
    %v439 = vsub.f32 %v437, %v371
    %v440 = vrcp.pop %v438
    %v441 = vrcp.pop %v439
    %v442 = vmul.f32 %v370, %v440
    %v443 = vmul.f32 %v371, %v441
    %v444 = vsub.f32 1.0, %v442
    %v445 = vsub.f32 1.0, %v443
    %v446 = vrcp.pop %v422
    %v447 = vrcp.pop %v423
    %v448 = vmul.f32 %v438, %v446
    %v449 = vmul.f32 %v439, %v447
    %v450 = vsub.f32 %v444, %v448
    %v451 = vsub.f32 %v445, %v449
    %v452 = vmul.f32 %v450, 2.0
    %v453 = vmul.f32 %v451, 2.0
    %v454 = vadd.f32 %v266, %v452
    %v455 = vadd.f32 %v269, %v453
    %456 = vst [vmem:[#allocation10] sm:$0xff] %v454
    %457 = vst [vmem:[#allocation10 + $0x8] sm:$0xff] %v455
    // Predicated region
    $region34: #{tpu_custom_call.1} parent=1 // pred_check
      _
    $region35: #{tpu_custom_call.1} parent=1 // pred_check_branch
      %459 = sbr.rel (0) target = $region37
    $region36: #{tpu_custom_call.1} parent=1 // pred_region
      %s461 = ssub.s32 256, 256
      %462 = vsyncadd [#allocation4], %s461
      %s463 = sshll.u32 [#allocation10], 4
      %s464 = int_to_ptr.vmem [resolvable:$true] %s463
      %469 = dma.vmem_to_hbm [thread:$0]  %s464, 256, %s4, [#allocation4], 128, 128, 8
    $region37: #{tpu_custom_call.1} parent=1 // pred_fallthru
      _
    // Predicated region
    $region38: #{tpu_custom_call.1} parent=1 // pred_check
      _
    $region39: #{tpu_custom_call.1} parent=1 // pred_check_branch
      %471 = sbr.rel (0) target = $region41
    $region40: #{tpu_custom_call.1} parent=1 // pred_region
      %472 = dma.done [#allocation4], 256
    $region41: #{tpu_custom_call.1} parent=1 // pred_fallthru
      _
    %473 = vsyncpa [#allocation3], 1
    %474 = vsyncpa [#allocation6], 1
    %475 = vsyncpa [#allocation9], 1
    %476 = vsyncpa [#allocation4], 1

// kernel: tpu_custom_call.1
$region0: #{tpu_custom_call.1}
  #allocation0 [shape = 'u32[]', space=smem, size = 0x4, offset = 0x4, fixed_abs, tag = 'smem constant byte address 0x4 - core index']
  #allocation1 [shape = 'u32[144,128]{1,0:T(1,128)}', space=vmem, size = 0x12000, scoped, tag = 'internal scratch']
  %s0 = inlined_call_operand.hbm [shape: f32[16,32], index: 0, kind: input, shape index: {}]
  %s1 = inlined_call_operand.hbm [shape: bf16[32,128], index: 1, kind: input, shape index: {}]
  %s2 = inlined_call_operand.hbm [shape: f32[16,16], index: 2, kind: input, shape index: {}]
  %s3 = inlined_call_operand.hbm [shape: f32[16,128], index: 3, kind: input, shape index: {}]
  %s4 = inlined_call_operand.hbm [shape: f32[16,128], index: 4, kind: output, shape index: {}]
  %s5 = sld [smem:[#allocation0]]
  $region42: #{tpu_custom_call.1} parent=0
    _
  %s7 = ssub.s32 1, %s5
  %s8 = scalar_select 0, %s7, %s5
  $region1: #{tpu_custom_call.1} parent=0
    #allocation2 [shape = 'u8[8192]{0}', space=vmem, size = 0x2000, scoped, tag = 'input window, operand 0, single buffered']
    #allocation3 [shape = 's32[1]{0}', space=sflag, size = 0x4, scoped, tag = 'scoped memory for tpu_custom_call.1']
    #allocation4 [shape = 's32[1]{0}', space=sflag, size = 0x4, scoped, tag = 'scoped memory for tpu_custom_call.1']
    #allocation5 [shape = 'u8[8192]{0}', space=vmem, size = 0x2000, scoped, tag = 'input window, operand 1, single buffered']
    #allocation6 [shape = 's32[1]{0}', space=sflag, size = 0x4, scoped, tag = 'scoped memory for tpu_custom_call.1']
    #allocation7 [shape = 'u8[8192]{0}', space=vmem, size = 0x2000, scoped, tag = 'input window, operand 2, single buffered']
    #allocation8 [shape = 'u8[8192]{0}', space=vmem, size = 0x2000, scoped, tag = 'input window, operand 3, single buffered']
    #allocation9 [shape = 's32[1]{0}', space=sflag, size = 0x4, scoped, tag = 'scoped memory for tpu_custom_call.1']
    #allocation10 [shape = 'u8[8192]{0}', space=vmem, size = 0x2000, scoped, tag = 'output window, operand 0, single buffered']
    %9 = vsyncpa [#allocation3], 0
    %10 = vsyncpa [#allocation6], 0
    %11 = vsyncpa [#allocation9], 0
    %12 = vsyncpa [#allocation4], 0
    // Predicated region
    $region2: #{tpu_custom_call.1} parent=1 // pred_check
      _
    $region3: #{tpu_custom_call.1} parent=1 // pred_check_branch
      %14 = sbr.rel (0) target = $region5
    $region4: #{tpu_custom_call.1} parent=1 // pred_region
      %s16 = ssub.s32 256, 256
      %17 = vsyncadd [#allocation3], %s16
      %s18 = sshll.u32 [#allocation2], 4
      %s19 = int_to_ptr.vmem [resolvable:$true] %s18
      %24 = dma.hbm_to_vmem [thread:$0]  %s0, 256, %s19, [#allocation3], 128, 128, 8
    $region5: #{tpu_custom_call.1} parent=1 // pred_fallthru
      _
    // Predicated region
    $region6: #{tpu_custom_call.1} parent=1 // pred_check
      _
    $region7: #{tpu_custom_call.1} parent=1 // pred_check_branch
      %26 = sbr.rel (0) target = $region9
    $region8: #{tpu_custom_call.1} parent=1 // pred_region
      %s28 = ssub.s32 256, 256
      %29 = vsyncadd [#allocation6], %s28
      %s30 = sshll.u32 [#allocation5], 4
      %s31 = int_to_ptr.vmem [resolvable:$true] %s30
      %36 = dma.hbm_to_vmem [thread:$0]  %s1, 256, %s31, [#allocation6], 64, 64, 4
    $region9: #{tpu_custom_call.1} parent=1 // pred_fallthru
      _
    // Predicated region
    $region10: #{tpu_custom_call.1} parent=1 // pred_check
      _
    $region11: #{tpu_custom_call.1} parent=1 // pred_check_branch
      %38 = sbr.rel (0) target = $region13
    $region12: #{tpu_custom_call.1} parent=1 // pred_region
      %s40 = ssub.s32 256, 256
      %41 = vsyncadd [#allocation6], %s40
      %s42 = sshll.u32 [#allocation7], 4
      %s43 = int_to_ptr.vmem [resolvable:$true] %s42
      %48 = dma.hbm_to_vmem [thread:$0]  %s2, 256, %s43, [#allocation6], 128, 128, 8
    $region13: #{tpu_custom_call.1} parent=1 // pred_fallthru
      _
    // Predicated region
    $region14: #{tpu_custom_call.1} parent=1 // pred_check
      _
    $region15: #{tpu_custom_call.1} parent=1 // pred_check_branch
      %50 = sbr.rel (0) target = $region17
    $region16: #{tpu_custom_call.1} parent=1 // pred_region
      %s52 = ssub.s32 256, 256
      %53 = vsyncadd [#allocation9], %s52
      %s54 = sshll.u32 [#allocation8], 4
      %s55 = int_to_ptr.vmem [resolvable:$true] %s54
      %60 = dma.hbm_to_vmem [thread:$0]  %s3, 256, %s55, [#allocation9], 128, 128, 8
    $region17: #{tpu_custom_call.1} parent=1 // pred_fallthru
      _
    // Predicated region
    $region18: #{tpu_custom_call.1} parent=1 // pred_check
      _
    $region19: #{tpu_custom_call.1} parent=1 // pred_check_branch
      %62 = sbr.rel (0) target = $region21
    $region20: #{tpu_custom_call.1} parent=1 // pred_region
      %63 = dma.done [#allocation3], 256
    $region21: #{tpu_custom_call.1} parent=1 // pred_fallthru
      _
    // Predicated region
    $region22: #{tpu_custom_call.1} parent=1 // pred_check
      _
    $region23: #{tpu_custom_call.1} parent=1 // pred_check_branch
      %65 = sbr.rel (0) target = $region25
    $region24: #{tpu_custom_call.1} parent=1 // pred_region
      %66 = dma.done [#allocation6], 256
    $region25: #{tpu_custom_call.1} parent=1 // pred_fallthru
      _
    // Predicated region
    $region26: #{tpu_custom_call.1} parent=1 // pred_check
      _
    $region27: #{tpu_custom_call.1} parent=1 // pred_check_branch
      %68 = sbr.rel (0) target = $region29
    $region28: #{tpu_custom_call.1} parent=1 // pred_region
      %69 = dma.done [#allocation6], 256
    $region29: #{tpu_custom_call.1} parent=1 // pred_fallthru
      _
    // Predicated region
    $region30: #{tpu_custom_call.1} parent=1 // pred_check
      _
    $region31: #{tpu_custom_call.1} parent=1 // pred_check_branch
      %71 = sbr.rel (0) target = $region33
    $region32: #{tpu_custom_call.1} parent=1 // pred_region
      %72 = dma.done [#allocation9], 256
    $region33: #{tpu_custom_call.1} parent=1 // pred_fallthru
      _
    %v74 = vld [vmem:[#allocation2] sm:$0xff]
    %v75 = vld [vmem:[#allocation2 + $0x8] sm:$0xff]
    %vm76 = vcmask 261120
    %v77 = vsel %vm76, %v74, -inf
    %78 = vmax.xlane.f32.xlu0 %v77
    %v79 = vpop.xlane.xlu0 %78
    %v80 = vsel %vm76, %v75, -inf
    %81 = vmax.xlane.f32.xlu0 %v80
    %v82 = vpop.xlane.xlu0 %81
    %v83 = vsub.f32 %v74, %v79
    %v84 = vsub.f32 %v75, %v82
    %v85 = vmul.f32 %v83, 1.442695
    %v86 = vpow.pop %v85
    %v87 = vmul.f32 %v84, 1.442695
    %v88 = vpow.pop %v87
    %v89 = vsel %vm76, %v86, 0.0
    %90 = vadd.xlane.f32.xlu0 %v89
    %v91 = vpop.xlane.xlu0 %90
    %v92 = vsel %vm76, %v88, 0.0
    %93 = vadd.xlane.f32.xlu0 %v92
    %v94 = vpop.xlane.xlu0 %93
    %v95 = vrcp.pop %v91
    %v96 = vmul.f32 %v86, %v95
    %v97 = vrcp.pop %v94
    %v98 = vmul.f32 %v88, %v97
    %v99 = vpack.c.bf16 %v98, %v96
    %v100 = vld [vmem:[#allocation5] sm:$0xf]
    %v101 = vld [vmem:[#allocation5 + $0x4] sm:$0xf]
    %v102 = vld [vmem:[#allocation5 + $0x8] sm:$0xf]
    %v103 = vld [vmem:[#allocation5 + $0xc] sm:$0xf]
    %v104 = vld [vmem:[#allocation7] sm:$0xff]
    %v105 = vld [vmem:[#allocation7 + $0x8] sm:$0xff]
    %v106 = vld [vmem:[#allocation8] sm:$0xff]
    %v107 = vld [vmem:[#allocation8 + $0x8] sm:$0xff]
    %109 = vset.pattern.permute.xlu0 0
    %110 = vperm.xlu0 %109, %v104
    %v111 = vpop.permute.xlu0 %110
    %114 = vset.pattern.permute.xlu0 0
    %115 = vperm.xlu0 %114, %v105
    %v116 = vpop.permute.xlu0 %115
    %v118 = vlaneseq
    %v119 = vshrl.u32 %v118, 7
    %v120 = vsub.s32 0, %v119
    %v121 = vrot.slane %v106, %v120
    %v122 = vsub.f32 %v111, %v121
    %v123 = vsub.f32 %v116, %v121
    %v124 = vand.u32 2147483647, %v122
    %v125 = vand.u32 2147483647, %v123
    %126 = vset.pattern.permute.xlu0 1
    %127 = vperm.xlu0 %126, %v104
    %v128 = vpop.permute.xlu0 %127
    %130 = vset.pattern.permute.xlu0 1
    %131 = vperm.xlu0 %130, %v105
    %v132 = vpop.permute.xlu0 %131
    %v134 = vlaneseq
    %v135 = vshrl.u32 %v134, 7
    %v136 = vsub.s32 1, %v135
    %v137 = vrot.slane %v106, %v136
    %v138 = vsub.f32 %v128, %v137
    %v139 = vsub.f32 %v132, %v137
    %v140 = vand.u32 2147483647, %v138
    %v141 = vand.u32 2147483647, %v139
    %v142 = vadd.f32 %v124, %v140
    %v143 = vadd.f32 %v125, %v141
    %144 = vset.pattern.permute.xlu0 2
    %145 = vperm.xlu0 %144, %v104
    %v146 = vpop.permute.xlu0 %145
    %148 = vset.pattern.permute.xlu0 2
    %149 = vperm.xlu0 %148, %v105
    %v150 = vpop.permute.xlu0 %149
    %v152 = vlaneseq
    %v153 = vshrl.u32 %v152, 7
    %v154 = vsub.s32 2, %v153
    %v155 = vrot.slane %v106, %v154
    %v156 = vsub.f32 %v146, %v155
    %v157 = vsub.f32 %v150, %v155
    %v158 = vand.u32 2147483647, %v156
    %v159 = vand.u32 2147483647, %v157
    %v160 = vadd.f32 %v142, %v158
    %v161 = vadd.f32 %v143, %v159
    %162 = vset.pattern.permute.xlu0 3
    %163 = vperm.xlu0 %162, %v104
    %v164 = vpop.permute.xlu0 %163
    %166 = vset.pattern.permute.xlu0 3
    %167 = vperm.xlu0 %166, %v105
    %v168 = vpop.permute.xlu0 %167
    %v170 = vlaneseq
    %v171 = vshrl.u32 %v170, 7
    %v172 = vsub.s32 3, %v171
    %v173 = vrot.slane %v106, %v172
    %v174 = vsub.f32 %v164, %v173
    %v175 = vsub.f32 %v168, %v173
    %v176 = vand.u32 2147483647, %v174
    %v177 = vand.u32 2147483647, %v175
    %v178 = vadd.f32 %v160, %v176
    %v179 = vadd.f32 %v161, %v177
    %180 = vset.pattern.permute.xlu0 4
    %181 = vperm.xlu0 %180, %v104
    %v182 = vpop.permute.xlu0 %181
    %184 = vset.pattern.permute.xlu0 4
    %185 = vperm.xlu0 %184, %v105
    %v186 = vpop.permute.xlu0 %185
    %v188 = vlaneseq
    %v189 = vshrl.u32 %v188, 7
    %v190 = vsub.s32 4, %v189
    %v191 = vrot.slane %v106, %v190
    %v192 = vsub.f32 %v182, %v191
    %v193 = vsub.f32 %v186, %v191
    %v194 = vand.u32 2147483647, %v192
    %v195 = vand.u32 2147483647, %v193
    %v196 = vadd.f32 %v178, %v194
    %v197 = vadd.f32 %v179, %v195
    %198 = vset.pattern.permute.xlu0 5
    %199 = vperm.xlu0 %198, %v104
    %v200 = vpop.permute.xlu0 %199
    %202 = vset.pattern.permute.xlu0 5
    %203 = vperm.xlu0 %202, %v105
    %v204 = vpop.permute.xlu0 %203
    %v206 = vlaneseq
    %v207 = vshrl.u32 %v206, 7
    %v208 = vsub.s32 5, %v207
    %v209 = vrot.slane %v106, %v208
    %v210 = vsub.f32 %v200, %v209
    %v211 = vsub.f32 %v204, %v209
    %v212 = vand.u32 2147483647, %v210
    %v213 = vand.u32 2147483647, %v211
    %v214 = vadd.f32 %v196, %v212
    %v215 = vadd.f32 %v197, %v213
    %v220 = vunpack.c.l.b16 %v100
    %v221 = vunpack.c.l.b16 %v101
    %v222 = vunpack.c.l.b16 %v102
    %v223 = vunpack.c.l.b16 %v103
    %v224 = vpack.c.b16 %v221, %v220
    %v225 = vpack.c.b16 %v223, %v222
    %v229 = vsel %vm76, %v99, 0
    %231 = vmatprep.subr.bf16.mxu0 0
    %232 = vmatpush1.bf16.msra.mxu0 %v224
    %233 = vmatprep.subr.bf16.mxu0 0
    %234 = vmatpush1.bf16.msra.mxu0 %v225
    %235 = vmatprep.subr.bf16.mxu0 0
    %236 = vmatpush1.bf16.msra.mxu0 0
    %237 = vmatprep.subr.bf16.mxu0 0
    %238 = vmatpush1.bf16.msra.mxu0 0
    %239 = vmatprep.subr.bf16.mxu0 0
    %240 = vmatpush1.bf16.msra.mxu0 0
    %241 = vmatprep.subr.bf16.mxu0 0
    %242 = vmatpush1.bf16.msra.mxu0 0
    %243 = vmatprep.subr.bf16.mxu0 0
    %244 = vmatpush1.bf16.msra.mxu0 0
    %245 = vmatprep.subr.bf16.mxu0 0
    %246 = vmatpush1.bf16.msra.mxu0 0
    %247 = vmatprep.subr.bf16.mxu0 0
    %248 = vmatpush1.bf16.msra.mxu0 0
    %249 = vmatprep.subr.bf16.mxu0 0
    %250 = vmatpush1.bf16.msra.mxu0 0
    %251 = vmatprep.subr.bf16.mxu0 0
    %252 = vmatpush1.bf16.msra.mxu0 0
    %253 = vmatprep.subr.bf16.mxu0 0
    %254 = vmatpush1.bf16.msra.mxu0 0
    %255 = vmatprep.subr.bf16.mxu0 0
    %256 = vmatpush1.bf16.msra.mxu0 0
    %257 = vmatprep.subr.bf16.mxu0 0
    %258 = vmatpush1.bf16.msra.mxu0 0
    %259 = vmatprep.subr.bf16.mxu0 0
    %260 = vmatpush1.bf16.msra.mxu0 0
    %261 = vmatprep.subr.bf16.mxu0 0
    %262 = vmatpush1.bf16.msra.mxu0 0
    %263 = vmatprep.mubr.bf16.mxu0 0
    %264 = vmatmul.mubr.bf16.gmra.mrb[0].mxu0 %v229
    %v265 = vpop.f32.mrb[0].mxu0
    %v266 = vadd.f32 %v214, %v265
    %v267 = vpop.f32.mrb[0].mxu0
    %v268 = vpop.f32.mrb[0].mxu0
    %v269 = vadd.f32 %v215, %v268
    %v270 = vpop.f32.mrb[0].mxu0
    %271 = vdwg.mxu0
    %272 = vset.pattern.permute.xlu0 9
    %273 = vperm.xlu0 %272, %v104
    %v274 = vpop.permute.xlu0 %273
    %276 = vset.pattern.permute.xlu0 9
    %277 = vperm.xlu0 %276, %v105
    %v278 = vpop.permute.xlu0 %277
    %v280 = vlaneseq
    %v281 = vshrl.u32 %v280, 7
    %v282 = vsub.s32 1, %v281
    %v283 = vrot.slane %v107, %v282
    %v284 = vmin.f32 %v274, %v283
    %v285 = vmin.f32 %v278, %v283
    %286 = vset.pattern.permute.xlu0 6
    %287 = vperm.xlu0 %286, %v104
    %v288 = vpop.permute.xlu0 %287
    %290 = vset.pattern.permute.xlu0 6
    %291 = vperm.xlu0 %290, %v105
    %v292 = vpop.permute.xlu0 %291
    %v294 = vlaneseq
    %v295 = vshrl.u32 %v294, 7
    %v296 = vsub.s32 6, %v295
    %v297 = vrot.slane %v106, %v296
    %v298 = vmax.f32 %v288, %v297
    %v299 = vmax.f32 %v292, %v297
    %v300 = vsub.f32 %v284, %v298
    %v301 = vsub.f32 %v285, %v299
    %302 = vset.pattern.permute.xlu0 10
    %303 = vperm.xlu0 %302, %v104
    %v304 = vpop.permute.xlu0 %303
    %306 = vset.pattern.permute.xlu0 10
    %307 = vperm.xlu0 %306, %v105
    %v308 = vpop.permute.xlu0 %307
    %v310 = vlaneseq
    %v311 = vshrl.u32 %v310, 7
    %v312 = vsub.s32 2, %v311
    %v313 = vrot.slane %v107, %v312
    %v314 = vmin.f32 %v304, %v313
    %v315 = vmin.f32 %v308, %v313
    %316 = vset.pattern.permute.xlu0 7
    %317 = vperm.xlu0 %316, %v104
    %v318 = vpop.permute.xlu0 %317
    %320 = vset.pattern.permute.xlu0 7
    %321 = vperm.xlu0 %320, %v105
    %v322 = vpop.permute.xlu0 %321
    %v324 = vlaneseq
    %v325 = vshrl.u32 %v324, 7
    %v326 = vsub.s32 7, %v325
    %v327 = vrot.slane %v106, %v326
    %v328 = vmax.f32 %v318, %v327
    %v329 = vmax.f32 %v322, %v327
    %v330 = vsub.f32 %v314, %v328
    %v331 = vsub.f32 %v315, %v329
    %332 = vset.pattern.permute.xlu0 11
    %333 = vperm.xlu0 %332, %v104
    %v334 = vpop.permute.xlu0 %333
    %336 = vset.pattern.permute.xlu0 11
    %337 = vperm.xlu0 %336, %v105
    %v338 = vpop.permute.xlu0 %337
    %v340 = vlaneseq
    %v341 = vshrl.u32 %v340, 7
    %v342 = vsub.s32 3, %v341
    %v343 = vrot.slane %v107, %v342
    %v344 = vmin.f32 %v334, %v343
    %v345 = vmin.f32 %v338, %v343
    %346 = vset.pattern.permute.xlu0 8
    %347 = vperm.xlu0 %346, %v104
    %v348 = vpop.permute.xlu0 %347
    %350 = vset.pattern.permute.xlu0 8
    %351 = vperm.xlu0 %350, %v105
    %v352 = vpop.permute.xlu0 %351
    %v354 = vlaneseq
    %v355 = vshrl.u32 %v354, 7
    %v356 = vsub.s32 0, %v355
    %v357 = vrot.slane %v107, %v356
    %v358 = vmax.f32 %v348, %v357
    %v359 = vmax.f32 %v352, %v357
    %v360 = vsub.f32 %v344, %v358
    %v361 = vsub.f32 %v345, %v359
    %v362 = vmax.f32 %v300, 0.0
    %v363 = vmax.f32 %v301, 0.0
    %v364 = vmax.f32 %v330, 0.0
    %v365 = vmax.f32 %v331, 0.0
    %v366 = vmul.f32 %v362, %v364
    %v367 = vmul.f32 %v363, %v365
    %v368 = vmax.f32 %v360, 0.0
    %v369 = vmax.f32 %v361, 0.0
    %v370 = vmul.f32 %v366, %v368
    %v371 = vmul.f32 %v367, %v369
    %372 = vset.pattern.permute.xlu0 13
    %373 = vperm.xlu0 %372, %v104
    %v374 = vpop.permute.xlu0 %373
    %376 = vset.pattern.permute.xlu0 13
    %377 = vperm.xlu0 %376, %v105
    %v378 = vpop.permute.xlu0 %377
    %v380 = vlaneseq
    %v381 = vshrl.u32 %v380, 7
    %v382 = vsub.s32 5, %v381
    %v383 = vrot.slane %v107, %v382
    %v384 = vadd.f32 %v374, %v383
    %v385 = vadd.f32 %v378, %v383
    %v386 = vsub.f32 %v384, %v300
    %v387 = vsub.f32 %v385, %v301
    %388 = vset.pattern.permute.xlu0 14
    %389 = vperm.xlu0 %388, %v104
    %v390 = vpop.permute.xlu0 %389
    %392 = vset.pattern.permute.xlu0 14
    %393 = vperm.xlu0 %392, %v105
    %v394 = vpop.permute.xlu0 %393
    %v396 = vlaneseq
    %v397 = vshrl.u32 %v396, 7
    %v398 = vsub.s32 6, %v397
    %v399 = vrot.slane %v107, %v398
    %v400 = vadd.f32 %v390, %v399
    %v401 = vadd.f32 %v394, %v399
    %v402 = vsub.f32 %v400, %v330
    %v403 = vsub.f32 %v401, %v331
    %v404 = vmul.f32 %v386, %v402
    %v405 = vmul.f32 %v387, %v403
    %406 = vset.pattern.permute.xlu0 15
    %407 = vperm.xlu0 %406, %v104
    %v408 = vpop.permute.xlu0 %407
    %410 = vset.pattern.permute.xlu0 15
    %411 = vperm.xlu0 %410, %v105
    %v412 = vpop.permute.xlu0 %411
    %v414 = vlaneseq
    %v415 = vshrl.u32 %v414, 7
    %v416 = vsub.s32 7, %v415
    %v417 = vrot.slane %v107, %v416
    %v418 = vadd.f32 %v408, %v417
    %v419 = vadd.f32 %v412, %v417
    %v420 = vsub.f32 %v418, %v360
    %v421 = vsub.f32 %v419, %v361
    %v422 = vmul.f32 %v404, %v420
    %v423 = vmul.f32 %v405, %v421
    %424 = vset.pattern.permute.xlu0 12
    %425 = vperm.xlu0 %424, %v104
    %v426 = vpop.permute.xlu0 %425
    %428 = vset.pattern.permute.xlu0 12
    %429 = vperm.xlu0 %428, %v105
    %v430 = vpop.permute.xlu0 %429
    %v432 = vlaneseq
    %v433 = vshrl.u32 %v432, 7
    %v434 = vsub.s32 4, %v433
    %v435 = vrot.slane %v107, %v434
    %v436 = vadd.f32 %v426, %v435
    %v437 = vadd.f32 %v430, %v435
    %v438 = vsub.f32 %v436, %v370
    %v439 = vsub.f32 %v437, %v371
    %v440 = vrcp.pop %v438
    %v441 = vrcp.pop %v439
    %v442 = vmul.f32 %v370, %v440
    %v443 = vmul.f32 %v371, %v441
    %v444 = vsub.f32 1.0, %v442
    %v445 = vsub.f32 1.0, %v443
    %v446 = vrcp.pop %v422
    %v447 = vrcp.pop %v423
    %v448 = vmul.f32 %v438, %v446
    %v449 = vmul.f32 %v439, %v447
    %v450 = vsub.f32 %v444, %v448
    %v451 = vsub.f32 %v445, %v449
    %v452 = vmul.f32 %v450, 2.0
    %v453 = vmul.f32 %v451, 2.0
    %v454 = vadd.f32 %v266, %v452
    %v455 = vadd.f32 %v269, %v453
    %456 = vst [vmem:[#allocation10] sm:$0xff] %v454
    %457 = vst [vmem:[#allocation10 + $0x8] sm:$0xff] %v455
    // Predicated region
    $region34: #{tpu_custom_call.1} parent=1 // pred_check
      _
    $region35: #{tpu_custom_call.1} parent=1 // pred_check_branch
      %459 = sbr.rel (0) target = $region37
    $region36: #{tpu_custom_call.1} parent=1 // pred_region
      %s461 = ssub.s32 256, 256
      %462 = vsyncadd [#allocation4], %s461
      %s463 = sshll.u32 [#allocation10], 4
      %s464 = int_to_ptr.vmem [resolvable:$true] %s463
      %469 = dma.vmem_to_hbm [thread:$0]  %s464, 256, %s4, [#allocation4], 128, 128, 8
    $region37: #{tpu_custom_call.1} parent=1 // pred_fallthru
      _
    // Predicated region
    $region38: #{tpu_custom_call.1} parent=1 // pred_check
      _
    $region39: #{tpu_custom_call.1} parent=1 // pred_check_branch
      %471 = sbr.rel (0) target = $region41
    $region40: #{tpu_custom_call.1} parent=1 // pred_region
      %472 = dma.done [#allocation4], 256
    $region41: #{tpu_custom_call.1} parent=1 // pred_fallthru
      _
    %473 = vsyncpa [#allocation3], 1
    %474 = vsyncpa [#allocation6], 1
    %475 = vsyncpa [#allocation9], 1
    %476 = vsyncpa [#allocation4], 1

</llo_original>
